<compile_context>
chip_gen: v6e
topology: v6e:2x2x1
jax: 0.10.0
libtpu: 0.0.40
codegen_flags: <defaults>
</compile_context>

<pallas_src>
import functools

import jax
import jax.numpy as jnp
from jax.experimental import pallas as pl
from jax.experimental.pallas import tpu as pltpu


def _vae_kernel(
    x_ref, eps_ref,
    w1e_ref, b1e_ref,        # encoder fc1         [in, hid] bf16, [1, hid] f32
    wml_ref, bml_ref,        # fused mu|logvar     [hid, 2L] bf16, [1, 2L]  f32
    w1d_ref, b1d_ref,        # decoder fc1         [L, hid]  bf16, [1, hid] f32
    w2d_ref, b2d_ref,        # decoder fc2         [hid, in] bf16, [1, in]  f32
    xrec_ref, mulv_ref,      # outputs: [bt, in] f32, packed [bt, 2L] f32
    *, latent_dim,
):
    x = x_ref[...]                                     # f32 activations

    # ---- Encoder ----
    h = jnp.dot(x.astype(jnp.bfloat16), w1e_ref[...],
                preferred_element_type=jnp.float32) + b1e_ref[...]
    h = jnp.maximum(h, 0.0)                            # ReLU (f32)

    # Fused fc_mu / fc_logvar: one MXU dot, lane-dense [bt, 2L] result.
    mulv = jnp.dot(h.astype(jnp.bfloat16), wml_ref[...],
                   preferred_element_type=jnp.float32) + bml_ref[...]
    mu = mulv[:, :latent_dim]
    logvar = mulv[:, latent_dim:]

    # ---- Reparameterize:  z = mu + eps * exp(0.5 * logvar)  (all f32) ----
    z = mu + eps_ref[...] * jnp.exp(0.5 * logvar)

    # ---- Decoder ----
    hd = jnp.dot(z.astype(jnp.bfloat16), w1d_ref[...],
                 preferred_element_type=jnp.float32) + b1d_ref[...]
    hd = jnp.maximum(hd, 0.0)                          # ReLU (f32)
    logits = jnp.dot(hd.astype(jnp.bfloat16), w2d_ref[...],
                     preferred_element_type=jnp.float32) + b2d_ref[...]

    xrec_ref[...] = jax.nn.sigmoid(logits).astype(xrec_ref.dtype)
    mulv_ref[...] = mulv.astype(mulv_ref.dtype)


def vae_forward(x, eps, params, *, block_b=256):
    """Full VAE forward pass in one pallas_call, gridded over the batch axis."""
    B, input_dim = x.shape
    latent_dim = eps.shape[1]

    # Batch tile: big enough to amortize per-step overhead, multiple of 8 sublanes.
    bt = min(block_b, B)
    bt = max(8, (bt // 8) * 8)
    n_steps = pl.cdiv(B, bt)
    B_pad = n_steps * bt
    if B_pad != B:
        x = jnp.pad(x, ((0, B_pad - B), (0, 0)))
        eps = jnp.pad(eps, ((0, B_pad - B), (0, 0)))

    def batch_spec(feat):
        return pl.BlockSpec((bt, feat), lambda i: (i, 0))

    def resident_spec(arr):
        # Constant index map -> weights/biases stay resident in VMEM across tiles.
        return pl.BlockSpec(arr.shape, lambda i: (0, 0))

    inputs = (
        x, eps,
        params["w1_enc"], params["b1_enc"],
        params["w_mulv"], params["b_mulv"],
        params["w1_dec"], params["b1_dec"],
        params["w2_dec"], params["b2_dec"],
    )
    in_specs = [batch_spec(input_dim), batch_spec(latent_dim)] + [
        resident_spec(a) for a in inputs[2:]
    ]

    out_shapes = (
        jax.ShapeDtypeStruct((B_pad, input_dim), jnp.float32),        # x_reconstructed
        jax.ShapeDtypeStruct((B_pad, 2 * latent_dim), jnp.float32),   # packed [mu | logvar]
    )
    out_specs = (batch_spec(input_dim), batch_spec(2 * latent_dim))

    x_rec, mulv = pl.pallas_call(
        functools.partial(_vae_kernel, latent_dim=latent_dim),
        grid=(n_steps,),
        in_specs=in_specs,
        out_specs=out_specs,
        out_shape=out_shapes,
        compiler_params=pltpu.CompilerParams(
            dimension_semantics=("parallel",),   # shard batch tiles across TCs (v7x megacore)
            vmem_limit_bytes=32 * 1024 * 1024,
        ),
    )(*inputs)

    x_rec = x_rec[:B]
    mu = mulv[:B, :latent_dim]
    logvar = mulv[:B, latent_dim:]
    return x_rec, mu, logvar


def init_params(key, input_dim, hidden_dim, latent_dim):
    """nn.Linear-style init; weights stored pre-transposed [in, out] in bf16, biases f32."""
    def linear(k, fan_in, fan_out):
        kw, kb = jax.random.split(k)
        bound = 1.0 / jnp.sqrt(fan_in)
        w = jax.random.uniform(kw, (fan_in, fan_out), jnp.float32, -bound, bound)
        b = jax.random.uniform(kb, (1, fan_out), jnp.float32, -bound, bound)
        return w.astype(jnp.bfloat16), b

    keys = jax.random.split(key, 5)
    w1e, b1e = linear(keys[0], input_dim, hidden_dim)
    wmu, bmu = linear(keys[1], hidden_dim, latent_dim)
    wlv, blv = linear(keys[2], hidden_dim, latent_dim)
    w1d, b1d = linear(keys[3], latent_dim, hidden_dim)
    w2d, b2d = linear(keys[4], hidden_dim, input_dim)
    return {
        "w1_enc": w1e, "b1_enc": b1e,
        # Fused [mu | logvar] projection: [hidden, 2*latent] weight, [1, 2*latent] bias.
        "w_mulv": jnp.concatenate([wmu, wlv], axis=1),
        "b_mulv": jnp.concatenate([bmu, blv], axis=1),
        "w1_dec": w1d, "b1_dec": b1d,
        "w2_dec": w2d, "b2_dec": b2d,
    }


def vae_forward_ref(x, eps, p, latent_dim):
    """Plain-JAX reference with the same bf16-operand / f32-accumulate matmuls."""
    def dot(a, w):
        return jnp.dot(a.astype(jnp.bfloat16), w, preferred_element_type=jnp.float32)

    h = jax.nn.relu(dot(x, p["w1_enc"]) + p["b1_enc"])
    mulv = dot(h, p["w_mulv"]) + p["b_mulv"]
    mu, logvar = mulv[:, :latent_dim], mulv[:, latent_dim:]
    z = mu + eps * jnp.exp(0.5 * logvar)
    hd = jax.nn.relu(dot(z, p["w1_dec"]) + p["b1_dec"])
    x_rec = jax.nn.sigmoid(dot(hd, p["w2_dec"]) + p["b2_dec"])
    return x_rec, mu, logvar


if __name__ == "__main__":
    # Small shapes consistent with the module: x is [batch, input_dim].
    # Batch chosen so the 1-D batch grid (tile=128) has >1 step.
    B, INPUT_DIM, HIDDEN_DIM, LATENT_DIM = 256, 64, 64, 16

    key = jax.random.PRNGKey(0)
    k_params, k_x, k_eps = jax.random.split(key, 3)

    params = init_params(k_params, INPUT_DIM, HIDDEN_DIM, LATENT_DIM)
    # BCE-style targets live in [0, 1]; use uniform data like binarized/normalized inputs.
    x = jax.random.uniform(k_x, (B, INPUT_DIM), jnp.float32)
    eps = jax.random.normal(k_eps, (B, LATENT_DIM), jnp.float32)

    x_rec, mu, logvar = jax.block_until_ready(vae_forward(x, eps, params, block_b=128))

    # Sanity check against the plain-JAX reference (same bf16 operands, f32 accumulation).
    x_rec_ref, mu_ref, logvar_ref = vae_forward_ref(x, eps, params, LATENT_DIM)
    assert jnp.allclose(x_rec, x_rec_ref, atol=1e-3, rtol=1e-3)
    assert jnp.allclose(mu, mu_ref, atol=1e-3, rtol=1e-3)
    assert jnp.allclose(logvar, logvar_ref, atol=1e-3, rtol=1e-3)

    print("KERNEL_OK")
</pallas_src>

<mosaic_0001>
module attributes {stable_mosaic.version = 11 : i64} {
  func.func @_vae_kernel(%arg0: i32, %arg1: memref<128x64xf32, #tpu.memory_space<vmem>>, %arg2: memref<128x16xf32, #tpu.memory_space<vmem>>, %arg3: memref<64x64xbf16, #tpu.memory_space<vmem>>, %arg4: memref<1x64xf32, #tpu.memory_space<vmem>>, %arg5: memref<64x32xbf16, #tpu.memory_space<vmem>>, %arg6: memref<1x32xf32, #tpu.memory_space<vmem>>, %arg7: memref<16x64xbf16, #tpu.memory_space<vmem>>, %arg8: memref<1x64xf32, #tpu.memory_space<vmem>>, %arg9: memref<64x64xbf16, #tpu.memory_space<vmem>>, %arg10: memref<1x64xf32, #tpu.memory_space<vmem>>, %arg11: memref<128x64xf32, #tpu.memory_space<vmem>>, %arg12: memref<128x32xf32, #tpu.memory_space<vmem>>) attributes {dimension_semantics = [#tpu.dimension_semantics<parallel>], iteration_bounds = array<i64: 2>, scalar_prefetch = 0 : i64, scratch_operands = 0 : i64, tpu.core_type = #tpu.core_type<tc>, window_params = [{transform_indices = @transform_0, window_bounds = array<i64: 128, 64>}, {transform_indices = @transform_1, window_bounds = array<i64: 128, 16>}, {pipeline_mode = #tpu.pipeline_mode<synchronous>, transform_indices = @transform_2, window_bounds = array<i64: 64, 64>}, {pipeline_mode = #tpu.pipeline_mode<synchronous>, transform_indices = @transform_3, window_bounds = array<i64: 1, 64>}, {pipeline_mode = #tpu.pipeline_mode<synchronous>, transform_indices = @transform_4, window_bounds = array<i64: 64, 32>}, {pipeline_mode = #tpu.pipeline_mode<synchronous>, transform_indices = @transform_5, window_bounds = array<i64: 1, 32>}, {pipeline_mode = #tpu.pipeline_mode<synchronous>, transform_indices = @transform_6, window_bounds = array<i64: 16, 64>}, {pipeline_mode = #tpu.pipeline_mode<synchronous>, transform_indices = @transform_7, window_bounds = array<i64: 1, 64>}, {pipeline_mode = #tpu.pipeline_mode<synchronous>, transform_indices = @transform_8, window_bounds = array<i64: 64, 64>}, {pipeline_mode = #tpu.pipeline_mode<synchronous>, transform_indices = @transform_9, window_bounds = array<i64: 1, 64>}, {transform_indices = @transform_10, window_bounds = array<i64: 128, 64>}, {transform_indices = @transform_11, window_bounds = array<i64: 128, 32>}]} {
    %c0 = arith.constant 0 : index
    %c0_0 = arith.constant 0 : index
    %0 = vector.load %arg1[%c0, %c0_0] : memref<128x64xf32, #tpu.memory_space<vmem>>, vector<128x64xf32>
    %1 = arith.truncf %0 : vector<128x64xf32> to vector<128x64xbf16>
    %c0_1 = arith.constant 0 : index
    %c0_2 = arith.constant 0 : index
    %2 = vector.load %arg3[%c0_1, %c0_2] : memref<64x64xbf16, #tpu.memory_space<vmem>>, vector<64x64xbf16>
    %cst = arith.constant dense<0.000000e+00> : vector<128x64xf32>
    %3 = tpu.matmul %1, %2, %cst {dimension_numbers = #tpu.dot_dimension_numbers<[1], [0], [0], [1], [0, 0, 1, 1], [], []>} : vector<128x64xbf16>, vector<64x64xbf16>, vector<128x64xf32> -> vector<128x64xf32>
    %c0_3 = arith.constant 0 : index
    %c0_4 = arith.constant 0 : index
    %4 = vector.load %arg4[%c0_3, %c0_4] : memref<1x64xf32, #tpu.memory_space<vmem>>, vector<1x64xf32>
    %5 = vector.broadcast %4 : vector<1x64xf32> to vector<128x64xf32>
    %6 = arith.addf %3, %5 : vector<128x64xf32>
    %cst_5 = arith.constant 0.000000e+00 : f32
    %7 = vector.broadcast %cst_5 : f32 to vector<128x64xf32>
    %8 = arith.maximumf %6, %7 : vector<128x64xf32>
    %9 = arith.truncf %8 : vector<128x64xf32> to vector<128x64xbf16>
    %c0_6 = arith.constant 0 : index
    %c0_7 = arith.constant 0 : index
    %10 = vector.load %arg5[%c0_6, %c0_7] : memref<64x32xbf16, #tpu.memory_space<vmem>>, vector<64x32xbf16>
    %cst_8 = arith.constant dense<0.000000e+00> : vector<128x32xf32>
    %11 = tpu.matmul %9, %10, %cst_8 {dimension_numbers = #tpu.dot_dimension_numbers<[1], [0], [0], [1], [0, 0, 1, 1], [], []>} : vector<128x64xbf16>, vector<64x32xbf16>, vector<128x32xf32> -> vector<128x32xf32>
    %c0_9 = arith.constant 0 : index
    %c0_10 = arith.constant 0 : index
    %12 = vector.load %arg6[%c0_9, %c0_10] : memref<1x32xf32, #tpu.memory_space<vmem>>, vector<1x32xf32>
    %13 = vector.broadcast %12 : vector<1x32xf32> to vector<128x32xf32>
    %14 = arith.addf %11, %13 : vector<128x32xf32>
    %15 = vector.extract_strided_slice %14 {offsets = [0, 0], sizes = [128, 16], strides = [1, 1]} : vector<128x32xf32> to vector<128x16xf32>
    %16 = vector.extract_strided_slice %14 {offsets = [0, 16], sizes = [128, 16], strides = [1, 1]} : vector<128x32xf32> to vector<128x16xf32>
    %c0_11 = arith.constant 0 : index
    %c0_12 = arith.constant 0 : index
    %17 = vector.load %arg2[%c0_11, %c0_12] : memref<128x16xf32, #tpu.memory_space<vmem>>, vector<128x16xf32>
    %cst_13 = arith.constant 5.000000e-01 : f32
    %18 = vector.broadcast %cst_13 : f32 to vector<128x16xf32>
    %19 = arith.mulf %18, %16 : vector<128x16xf32>
    %20 = math.exp %19 : vector<128x16xf32>
    %21 = arith.mulf %17, %20 : vector<128x16xf32>
    %22 = arith.addf %15, %21 : vector<128x16xf32>
    %23 = arith.truncf %22 : vector<128x16xf32> to vector<128x16xbf16>
    %c0_14 = arith.constant 0 : index
    %c0_15 = arith.constant 0 : index
    %24 = vector.load %arg7[%c0_14, %c0_15] : memref<16x64xbf16, #tpu.memory_space<vmem>>, vector<16x64xbf16>
    %cst_16 = arith.constant dense<0.000000e+00> : vector<128x64xf32>
    %25 = tpu.matmul %23, %24, %cst_16 {dimension_numbers = #tpu.dot_dimension_numbers<[1], [0], [0], [1], [0, 0, 1, 1], [], []>} : vector<128x16xbf16>, vector<16x64xbf16>, vector<128x64xf32> -> vector<128x64xf32>
    %c0_17 = arith.constant 0 : index
    %c0_18 = arith.constant 0 : index
    %26 = vector.load %arg8[%c0_17, %c0_18] : memref<1x64xf32, #tpu.memory_space<vmem>>, vector<1x64xf32>
    %27 = vector.broadcast %26 : vector<1x64xf32> to vector<128x64xf32>
    %28 = arith.addf %25, %27 : vector<128x64xf32>
    %cst_19 = arith.constant 0.000000e+00 : f32
    %29 = vector.broadcast %cst_19 : f32 to vector<128x64xf32>
    %30 = arith.maximumf %28, %29 : vector<128x64xf32>
    %31 = arith.truncf %30 : vector<128x64xf32> to vector<128x64xbf16>
    %c0_20 = arith.constant 0 : index
    %c0_21 = arith.constant 0 : index
    %32 = vector.load %arg9[%c0_20, %c0_21] : memref<64x64xbf16, #tpu.memory_space<vmem>>, vector<64x64xbf16>
    %cst_22 = arith.constant dense<0.000000e+00> : vector<128x64xf32>
    %33 = tpu.matmul %31, %32, %cst_22 {dimension_numbers = #tpu.dot_dimension_numbers<[1], [0], [0], [1], [0, 0, 1, 1], [], []>} : vector<128x64xbf16>, vector<64x64xbf16>, vector<128x64xf32> -> vector<128x64xf32>
    %c0_23 = arith.constant 0 : index
    %c0_24 = arith.constant 0 : index
    %34 = vector.load %arg10[%c0_23, %c0_24] : memref<1x64xf32, #tpu.memory_space<vmem>>, vector<1x64xf32>
    %35 = vector.broadcast %34 : vector<1x64xf32> to vector<128x64xf32>
    %36 = arith.addf %33, %35 : vector<128x64xf32>
    %37 = arith.negf %36 : vector<128x64xf32>
    %38 = math.exp %37 : vector<128x64xf32>
    %cst_25 = arith.constant 1.000000e+00 : f32
    %39 = vector.broadcast %cst_25 : f32 to vector<128x64xf32>
    %40 = arith.addf %39, %38 : vector<128x64xf32>
    %41 = arith.divf %39, %40 : vector<128x64xf32>
    %c0_26 = arith.constant 0 : index
    %c0_27 = arith.constant 0 : index
    %42 = vector.load %arg11[%c0_26, %c0_27] : memref<128x64xf32, #tpu.memory_space<vmem>>, vector<128x64xf32>
    tpu.vector_store %arg11[%c0_26, %c0_27], %41 {strides = array<i32>} : memref<128x64xf32, #tpu.memory_space<vmem>>, vector<128x64xf32>,
    %c0_28 = arith.constant 0 : index
    %c0_29 = arith.constant 0 : index
    %43 = vector.load %arg12[%c0_28, %c0_29] : memref<128x32xf32, #tpu.memory_space<vmem>>, vector<128x32xf32>
    tpu.vector_store %arg12[%c0_28, %c0_29], %14 {strides = array<i32>} : memref<128x32xf32, #tpu.memory_space<vmem>>, vector<128x32xf32>,
    return
  }
  func.func @transform_0(%arg0: i32) -> (i32, i32) {
    %c0_i32 = arith.constant 0 : i32
    %c0_i32_0 = arith.constant 0 : i32
    return %arg0, %c0_i32 : i32, i32
  }
  func.func @transform_1(%arg0: i32) -> (i32, i32) {
    %c0_i32 = arith.constant 0 : i32
    %c0_i32_0 = arith.constant 0 : i32
    return %arg0, %c0_i32 : i32, i32
  }
  func.func @transform_2(%arg0: i32) -> (i32, i32) {
    %c0_i32 = arith.constant 0 : i32
    %c0_i32_0 = arith.constant 0 : i32
    %c0_i32_1 = arith.constant 0 : i32
    return %c0_i32, %c0_i32_0 : i32, i32
  }
  func.func @transform_3(%arg0: i32) -> (i32, i32) {
    %c0_i32 = arith.constant 0 : i32
    %c0_i32_0 = arith.constant 0 : i32
    %c0_i32_1 = arith.constant 0 : i32
    return %c0_i32, %c0_i32_0 : i32, i32
  }
  func.func @transform_4(%arg0: i32) -> (i32, i32) {
    %c0_i32 = arith.constant 0 : i32
    %c0_i32_0 = arith.constant 0 : i32
    %c0_i32_1 = arith.constant 0 : i32
    return %c0_i32, %c0_i32_0 : i32, i32
  }
  func.func @transform_5(%arg0: i32) -> (i32, i32) {
    %c0_i32 = arith.constant 0 : i32
    %c0_i32_0 = arith.constant 0 : i32
    %c0_i32_1 = arith.constant 0 : i32
    return %c0_i32, %c0_i32_0 : i32, i32
  }
  func.func @transform_6(%arg0: i32) -> (i32, i32) {
    %c0_i32 = arith.constant 0 : i32
    %c0_i32_0 = arith.constant 0 : i32
    %c0_i32_1 = arith.constant 0 : i32
    return %c0_i32, %c0_i32_0 : i32, i32
  }
  func.func @transform_7(%arg0: i32) -> (i32, i32) {
    %c0_i32 = arith.constant 0 : i32
    %c0_i32_0 = arith.constant 0 : i32
    %c0_i32_1 = arith.constant 0 : i32
    return %c0_i32, %c0_i32_0 : i32, i32
  }
  func.func @transform_8(%arg0: i32) -> (i32, i32) {
    %c0_i32 = arith.constant 0 : i32
    %c0_i32_0 = arith.constant 0 : i32
    %c0_i32_1 = arith.constant 0 : i32
    return %c0_i32, %c0_i32_0 : i32, i32
  }
  func.func @transform_9(%arg0: i32) -> (i32, i32) {
    %c0_i32 = arith.constant 0 : i32
    %c0_i32_0 = arith.constant 0 : i32
    %c0_i32_1 = arith.constant 0 : i32
    return %c0_i32, %c0_i32_0 : i32, i32
  }
  func.func @transform_10(%arg0: i32) -> (i32, i32) {
    %c0_i32 = arith.constant 0 : i32
    %c0_i32_0 = arith.constant 0 : i32
    return %arg0, %c0_i32 : i32, i32
  }
  func.func @transform_11(%arg0: i32) -> (i32, i32) {
    %c0_i32 = arith.constant 0 : i32
    %c0_i32_0 = arith.constant 0 : i32
    return %arg0, %c0_i32 : i32, i32
  }
}

</mosaic_0001>

<llo_original>
// kernel: tpu_custom_call.1
$region0: #{tpu_custom_call.1}
  #allocation0 [shape = 'u32[]', space=smem, size = 0x4, offset = 0x4, fixed_abs, tag = 'smem constant byte address 0x4 - core index']
  #allocation1 [shape = 'u32[144,128]{1,0:T(1,128)}', space=vmem, size = 0x12000, scoped, tag = 'internal scratch']
  %s0 = inlined_call_operand.vmem [shape: f32[256,64], index: 0, kind: input, shape index: {}]
  %s1 = inlined_call_operand.vmem [shape: f32[256,16], index: 1, kind: input, shape index: {}]
  %s2 = inlined_call_operand.vmem [shape: bf16[64,64], index: 2, kind: input, shape index: {}]
  %s3 = inlined_call_operand.vmem [shape: f32[1,64], index: 3, kind: input, shape index: {}]
  %s4 = inlined_call_operand.vmem [shape: bf16[64,32], index: 4, kind: input, shape index: {}]
  %s5 = inlined_call_operand.vmem [shape: f32[1,32], index: 5, kind: input, shape index: {}]
  %s6 = inlined_call_operand.vmem [shape: bf16[16,64], index: 6, kind: input, shape index: {}]
  %s7 = inlined_call_operand.vmem [shape: f32[1,64], index: 7, kind: input, shape index: {}]
  %s8 = inlined_call_operand.vmem [shape: bf16[64,64], index: 8, kind: input, shape index: {}]
  %s9 = inlined_call_operand.vmem [shape: f32[1,64], index: 9, kind: input, shape index: {}]
  %s10 = inlined_call_operand.vmem [shape: f32[256,64], index: 10, kind: output, shape index: {0}]
  %s11 = inlined_call_operand.vmem [shape: f32[256,32], index: 11, kind: output, shape index: {1}]
  %12 = xla_tuple %s10, %s11
  %s13 = sld [smem:[#allocation0]]
  $region81: #{tpu_custom_call.1} parent=0
    _
  %s15 = ssub.s32 1, %s13
  %s16 = scalar_select 0, %s15, %s13
  loop: start=0, step=1, limit=4
  $region2: #{tpu_custom_call.1} parent=0 // loop_pre_header
    _
  $region3: #{tpu_custom_call.1} parent=0 // loop_header
    %s18 = sphi 0, %s22
    %p19 = scmp.ge.s32.totalorder %s18, 4
    %s28 = sphi 0, %s30
    %s31 = sphi 0, %s28
    %s32 = sphi 0, %s31
    %s48 = sphi 0, %s32
    %s54 = sphi 0, %s56
    %s57 = sphi 0, %s54
    %s58 = sphi 0, %s57
    %s74 = sphi 0, %s58
    %s78 = sphi 0, %s78
    %s80 = sphi 0, %s78
    %s81 = sphi 0, %s80
    %s95 = sphi 0, %s81
    %s99 = sphi 0, %s99
    %s101 = sphi 0, %s99
    %s102 = sphi 0, %s101
    %s116 = sphi 0, %s102
    %s120 = sphi 0, %s120
    %s122 = sphi 0, %s120
    %s123 = sphi 0, %s122
    %s137 = sphi 0, %s123
    %s141 = sphi 0, %s141
    %s143 = sphi 0, %s141
    %s144 = sphi 0, %s143
    %s158 = sphi 0, %s144
    %s162 = sphi 0, %s162
    %s164 = sphi 0, %s162
    %s165 = sphi 0, %s164
    %s179 = sphi 0, %s165
    %s183 = sphi 0, %s183
    %s185 = sphi 0, %s183
    %s186 = sphi 0, %s185
    %s200 = sphi 0, %s186
    %s204 = sphi 0, %s204
    %s206 = sphi 0, %s204
    %s207 = sphi 0, %s206
    %s221 = sphi 0, %s207
    %s225 = sphi 0, %s225
    %s227 = sphi 0, %s225
    %s228 = sphi 0, %s227
    %s242 = sphi 0, %s228
    %s248 = sphi 0, %s250
    %s251 = sphi 0, %s248
    %s252 = sphi 0, %s251
    %s268 = sphi 0, %s252
    %s274 = sphi 0, %s276
    %s277 = sphi 0, %s274
    %s278 = sphi 0, %s277
    %s294 = sphi 0, %s278
  $region4: #{tpu_custom_call.1} parent=0 // loop_header_branch
    %21 = sbr.rel (%p19) target = $region8
  $region5: #{tpu_custom_call.1} parent=0 // loop_body
    %s23 = ssub.s32 %s18, 1
    %s24 = ssub.s32 %s18, 2
    %s25 = sadd.s32 %s18, 1
    %s26 = ssub.s32 %s18, %s25
    %p27 = scmp.eq.s32.totalorder %s26, 0
    %s29 = sadd.s32 %s28, 1
    %s30 = scalar_select %p27, %s28, %s29
    %p33 = pneg %p27
    %p34 = scmp.eq.s32.totalorder %s18, 1
    %p35 = por %p33, %p34
    %p36 = scmp.ne.s32.totalorder %s28, %s31
    %p37 = scmp.eq.s32.totalorder %s18, 0
    %p38 = por %p36, %p37
    %p39 = scmp.ne.s32.totalorder %s28, %s31
    %p40 = scmp.eq.s32.totalorder %s23, 1
    %p41 = por %p39, %p40
    %p42 = scmp.ne.s32.totalorder %s31, %s32
    %p43 = scmp.eq.s32.totalorder %s23, 0
    %p44 = por %p42, %p43
    %p45 = scmp.ne.s32.totalorder %s31, %s32
    %p46 = scmp.eq.s32.totalorder %s24, 1
    %p47 = por %p45, %p46
    %p49 = scmp.ne.s32.totalorder %s32, %s48
    %p50 = scmp.eq.s32.totalorder %s24, 0
    %p51 = por %p49, %p50
    %s52 = ssub.s32 %s18, %s25
    %p53 = scmp.eq.s32.totalorder %s52, 0
    %s55 = sadd.s32 %s54, 1
    %s56 = scalar_select %p53, %s54, %s55
    %p59 = pneg %p53
    %p60 = scmp.eq.s32.totalorder %s18, 1
    %p61 = por %p59, %p60
    %p62 = scmp.ne.s32.totalorder %s54, %s57
    %p63 = scmp.eq.s32.totalorder %s18, 0
    %p64 = por %p62, %p63
    %p65 = scmp.ne.s32.totalorder %s54, %s57
    %p66 = scmp.eq.s32.totalorder %s23, 1
    %p67 = por %p65, %p66
    %p68 = scmp.ne.s32.totalorder %s57, %s58
    %p69 = scmp.eq.s32.totalorder %s23, 0
    %p70 = por %p68, %p69
    %p71 = scmp.ne.s32.totalorder %s57, %s58
    %p72 = scmp.eq.s32.totalorder %s24, 1
    %p73 = por %p71, %p72
    %p75 = scmp.ne.s32.totalorder %s58, %s74
    %p76 = scmp.eq.s32.totalorder %s24, 0
    %p77 = por %p75, %p76
    %s79 = sadd.s32 %s78, 1
    %p82 = scmp.eq.s32.totalorder %s18, 1
    %p83 = scmp.ne.s32.totalorder %s78, %s80
    %p84 = scmp.eq.s32.totalorder %s18, 0
    %p85 = por %p83, %p84
    %p86 = scmp.ne.s32.totalorder %s78, %s80
    %p87 = scmp.eq.s32.totalorder %s23, 1
    %p88 = por %p86, %p87
    %p89 = scmp.ne.s32.totalorder %s80, %s81
    %p90 = scmp.eq.s32.totalorder %s23, 0
    %p91 = por %p89, %p90
    %p92 = scmp.ne.s32.totalorder %s80, %s81
    %p93 = scmp.eq.s32.totalorder %s24, 1
    %p94 = por %p92, %p93
    %p96 = scmp.ne.s32.totalorder %s81, %s95
    %p97 = scmp.eq.s32.totalorder %s24, 0
    %p98 = por %p96, %p97
    %s100 = sadd.s32 %s99, 1
    %p103 = scmp.eq.s32.totalorder %s18, 1
    %p104 = scmp.ne.s32.totalorder %s99, %s101
    %p105 = scmp.eq.s32.totalorder %s18, 0
    %p106 = por %p104, %p105
    %p107 = scmp.ne.s32.totalorder %s99, %s101
    %p108 = scmp.eq.s32.totalorder %s23, 1
    %p109 = por %p107, %p108
    %p110 = scmp.ne.s32.totalorder %s101, %s102
    %p111 = scmp.eq.s32.totalorder %s23, 0
    %p112 = por %p110, %p111
    %p113 = scmp.ne.s32.totalorder %s101, %s102
    %p114 = scmp.eq.s32.totalorder %s24, 1
    %p115 = por %p113, %p114
    %p117 = scmp.ne.s32.totalorder %s102, %s116
    %p118 = scmp.eq.s32.totalorder %s24, 0
    %p119 = por %p117, %p118
    %s121 = sadd.s32 %s120, 1
    %p124 = scmp.eq.s32.totalorder %s18, 1
    %p125 = scmp.ne.s32.totalorder %s120, %s122
    %p126 = scmp.eq.s32.totalorder %s18, 0
    %p127 = por %p125, %p126
    %p128 = scmp.ne.s32.totalorder %s120, %s122
    %p129 = scmp.eq.s32.totalorder %s23, 1
    %p130 = por %p128, %p129
    %p131 = scmp.ne.s32.totalorder %s122, %s123
    %p132 = scmp.eq.s32.totalorder %s23, 0
    %p133 = por %p131, %p132
    %p134 = scmp.ne.s32.totalorder %s122, %s123
    %p135 = scmp.eq.s32.totalorder %s24, 1
    %p136 = por %p134, %p135
    %p138 = scmp.ne.s32.totalorder %s123, %s137
    %p139 = scmp.eq.s32.totalorder %s24, 0
    %p140 = por %p138, %p139
    %s142 = sadd.s32 %s141, 1
    %p145 = scmp.eq.s32.totalorder %s18, 1
    %p146 = scmp.ne.s32.totalorder %s141, %s143
    %p147 = scmp.eq.s32.totalorder %s18, 0
    %p148 = por %p146, %p147
    %p149 = scmp.ne.s32.totalorder %s141, %s143
    %p150 = scmp.eq.s32.totalorder %s23, 1
    %p151 = por %p149, %p150
    %p152 = scmp.ne.s32.totalorder %s143, %s144
    %p153 = scmp.eq.s32.totalorder %s23, 0
    %p154 = por %p152, %p153
    %p155 = scmp.ne.s32.totalorder %s143, %s144
    %p156 = scmp.eq.s32.totalorder %s24, 1
    %p157 = por %p155, %p156
    %p159 = scmp.ne.s32.totalorder %s144, %s158
    %p160 = scmp.eq.s32.totalorder %s24, 0
    %p161 = por %p159, %p160
    %s163 = sadd.s32 %s162, 1
    %p166 = scmp.eq.s32.totalorder %s18, 1
    %p167 = scmp.ne.s32.totalorder %s162, %s164
    %p168 = scmp.eq.s32.totalorder %s18, 0
    %p169 = por %p167, %p168
    %p170 = scmp.ne.s32.totalorder %s162, %s164
    %p171 = scmp.eq.s32.totalorder %s23, 1
    %p172 = por %p170, %p171
    %p173 = scmp.ne.s32.totalorder %s164, %s165
    %p174 = scmp.eq.s32.totalorder %s23, 0
    %p175 = por %p173, %p174
    %p176 = scmp.ne.s32.totalorder %s164, %s165
    %p177 = scmp.eq.s32.totalorder %s24, 1
    %p178 = por %p176, %p177
    %p180 = scmp.ne.s32.totalorder %s165, %s179
    %p181 = scmp.eq.s32.totalorder %s24, 0
    %p182 = por %p180, %p181
    %s184 = sadd.s32 %s183, 1
    %p187 = scmp.eq.s32.totalorder %s18, 1
    %p188 = scmp.ne.s32.totalorder %s183, %s185
    %p189 = scmp.eq.s32.totalorder %s18, 0
    %p190 = por %p188, %p189
    %p191 = scmp.ne.s32.totalorder %s183, %s185
    %p192 = scmp.eq.s32.totalorder %s23, 1
    %p193 = por %p191, %p192
    %p194 = scmp.ne.s32.totalorder %s185, %s186
    %p195 = scmp.eq.s32.totalorder %s23, 0
    %p196 = por %p194, %p195
    %p197 = scmp.ne.s32.totalorder %s185, %s186
    %p198 = scmp.eq.s32.totalorder %s24, 1
    %p199 = por %p197, %p198
    %p201 = scmp.ne.s32.totalorder %s186, %s200
    %p202 = scmp.eq.s32.totalorder %s24, 0
    %p203 = por %p201, %p202
    %s205 = sadd.s32 %s204, 1
    %p208 = scmp.eq.s32.totalorder %s18, 1
    %p209 = scmp.ne.s32.totalorder %s204, %s206
    %p210 = scmp.eq.s32.totalorder %s18, 0
    %p211 = por %p209, %p210
    %p212 = scmp.ne.s32.totalorder %s204, %s206
    %p213 = scmp.eq.s32.totalorder %s23, 1
    %p214 = por %p212, %p213
    %p215 = scmp.ne.s32.totalorder %s206, %s207
    %p216 = scmp.eq.s32.totalorder %s23, 0
    %p217 = por %p215, %p216
    %p218 = scmp.ne.s32.totalorder %s206, %s207
    %p219 = scmp.eq.s32.totalorder %s24, 1
    %p220 = por %p218, %p219
    %p222 = scmp.ne.s32.totalorder %s207, %s221
    %p223 = scmp.eq.s32.totalorder %s24, 0
    %p224 = por %p222, %p223
    %s226 = sadd.s32 %s225, 1
    %p229 = scmp.eq.s32.totalorder %s18, 1
    %p230 = scmp.ne.s32.totalorder %s225, %s227
    %p231 = scmp.eq.s32.totalorder %s18, 0
    %p232 = por %p230, %p231
    %p233 = scmp.ne.s32.totalorder %s225, %s227
    %p234 = scmp.eq.s32.totalorder %s23, 1
    %p235 = por %p233, %p234
    %p236 = scmp.ne.s32.totalorder %s227, %s228
    %p237 = scmp.eq.s32.totalorder %s23, 0
    %p238 = por %p236, %p237
    %p239 = scmp.ne.s32.totalorder %s227, %s228
    %p240 = scmp.eq.s32.totalorder %s24, 1
    %p241 = por %p239, %p240
    %p243 = scmp.ne.s32.totalorder %s228, %s242
    %p244 = scmp.eq.s32.totalorder %s24, 0
    %p245 = por %p243, %p244
    %s246 = ssub.s32 %s18, %s25
    %p247 = scmp.eq.s32.totalorder %s246, 0
    %s249 = sadd.s32 %s248, 1
    %s250 = scalar_select %p247, %s248, %s249
    %p253 = pneg %p247
    %p254 = scmp.eq.s32.totalorder %s18, 1
    %p255 = por %p253, %p254
    %p256 = scmp.ne.s32.totalorder %s248, %s251
    %p257 = scmp.eq.s32.totalorder %s18, 0
    %p258 = por %p256, %p257
    %p259 = scmp.ne.s32.totalorder %s248, %s251
    %p260 = scmp.eq.s32.totalorder %s23, 1
    %p261 = por %p259, %p260
    %p262 = scmp.ne.s32.totalorder %s251, %s252
    %p263 = scmp.eq.s32.totalorder %s23, 0
    %p264 = por %p262, %p263
    %p265 = scmp.ne.s32.totalorder %s251, %s252
    %p266 = scmp.eq.s32.totalorder %s24, 1
    %p267 = por %p265, %p266
    %p269 = scmp.ne.s32.totalorder %s252, %s268
    %p270 = scmp.eq.s32.totalorder %s24, 0
    %p271 = por %p269, %p270
    %s272 = ssub.s32 %s18, %s25
    %p273 = scmp.eq.s32.totalorder %s272, 0
    %s275 = sadd.s32 %s274, 1
    %s276 = scalar_select %p273, %s274, %s275
    %p279 = pneg %p273
    %p280 = scmp.eq.s32.totalorder %s18, 1
    %p281 = por %p279, %p280
    %p282 = scmp.ne.s32.totalorder %s274, %s277
    %p283 = scmp.eq.s32.totalorder %s18, 0
    %p284 = por %p282, %p283
    %p285 = scmp.ne.s32.totalorder %s274, %s277
    %p286 = scmp.eq.s32.totalorder %s23, 1
    %p287 = por %p285, %p286
    %p288 = scmp.ne.s32.totalorder %s277, %s278
    %p289 = scmp.eq.s32.totalorder %s23, 0
    %p290 = por %p288, %p289
    %p291 = scmp.ne.s32.totalorder %s277, %s278
    %p292 = scmp.eq.s32.totalorder %s24, 1
    %p293 = por %p291, %p292
    %p295 = scmp.ne.s32.totalorder %s278, %s294
    %p296 = scmp.eq.s32.totalorder %s24, 0
    %p297 = por %p295, %p296
    %p298 = scmp.le.s32.totalorder 1, %s18
    %p299 = scmp.lt.s32.totalorder %s18, 3
    %p300 = pnand %p298, %p299
    %p301 = pneg %p300
    // Predicated region
    $region9: #{tpu_custom_call.1} parent=5 // pred_check
      _
    $region10: #{tpu_custom_call.1} parent=5 // pred_check_branch
      %303 = sbr.rel (%p300) target = $region12
    $region11: #{tpu_custom_call.1} parent=5 // pred_region
      %s304 = ssub.s32 %s18, 1
      // Predicated region
      $region13: #{tpu_custom_call.1} parent=11 // pred_check
        %p305 = pneg %p91
      $region14: #{tpu_custom_call.1} parent=11 // pred_check_branch
        %307 = sbr.rel (%p305) target = $region16
      $region15: #{tpu_custom_call.1} parent=11 // pred_region
        _
      $region16: #{tpu_custom_call.1} parent=11 // pred_fallthru
        _
      // Predicated region
      $region17: #{tpu_custom_call.1} parent=11 // pred_check
        %p308 = pneg %p112
      $region18: #{tpu_custom_call.1} parent=11 // pred_check_branch
        %310 = sbr.rel (%p308) target = $region20
      $region19: #{tpu_custom_call.1} parent=11 // pred_region
        _
      $region20: #{tpu_custom_call.1} parent=11 // pred_fallthru
        _
      // Predicated region
      $region21: #{tpu_custom_call.1} parent=11 // pred_check
        %p311 = pneg %p133
      $region22: #{tpu_custom_call.1} parent=11 // pred_check_branch
        %313 = sbr.rel (%p311) target = $region24
      $region23: #{tpu_custom_call.1} parent=11 // pred_region
        _
      $region24: #{tpu_custom_call.1} parent=11 // pred_fallthru
        _
      // Predicated region
      $region25: #{tpu_custom_call.1} parent=11 // pred_check
        %p314 = pneg %p154
      $region26: #{tpu_custom_call.1} parent=11 // pred_check_branch
        %316 = sbr.rel (%p314) target = $region28
      $region27: #{tpu_custom_call.1} parent=11 // pred_region
        _
      $region28: #{tpu_custom_call.1} parent=11 // pred_fallthru
        _
      // Predicated region
      $region29: #{tpu_custom_call.1} parent=11 // pred_check
        %p317 = pneg %p175
      $region30: #{tpu_custom_call.1} parent=11 // pred_check_branch
        %319 = sbr.rel (%p317) target = $region32
      $region31: #{tpu_custom_call.1} parent=11 // pred_region
        _
      $region32: #{tpu_custom_call.1} parent=11 // pred_fallthru
        _
      // Predicated region
      $region33: #{tpu_custom_call.1} parent=11 // pred_check
        %p320 = pneg %p196
      $region34: #{tpu_custom_call.1} parent=11 // pred_check_branch
        %322 = sbr.rel (%p320) target = $region36
      $region35: #{tpu_custom_call.1} parent=11 // pred_region
        _
      $region36: #{tpu_custom_call.1} parent=11 // pred_fallthru
        _
      // Predicated region
      $region37: #{tpu_custom_call.1} parent=11 // pred_check
        %p323 = pneg %p217
      $region38: #{tpu_custom_call.1} parent=11 // pred_check_branch
        %325 = sbr.rel (%p323) target = $region40
      $region39: #{tpu_custom_call.1} parent=11 // pred_region
        _
      $region40: #{tpu_custom_call.1} parent=11 // pred_fallthru
        _
      // Predicated region
      $region41: #{tpu_custom_call.1} parent=11 // pred_check
        %p326 = pneg %p238
      $region42: #{tpu_custom_call.1} parent=11 // pred_check_branch
        %328 = sbr.rel (%p326) target = $region44
      $region43: #{tpu_custom_call.1} parent=11 // pred_region
        _
      $region44: #{tpu_custom_call.1} parent=11 // pred_fallthru
        _
    $region12: #{tpu_custom_call.1} parent=5 // pred_fallthru
      _
    %p329 = scmp.lt.s32.totalorder %s18, 2
    // Predicated region
    $region45: #{tpu_custom_call.1} parent=5 // pred_check
      %p330 = pneg %p329
    $region46: #{tpu_custom_call.1} parent=5 // pred_check_branch
      %332 = sbr.rel (%p330) target = $region48
    $region47: #{tpu_custom_call.1} parent=5 // pred_region
      // Predicated region
      $region49: #{tpu_custom_call.1} parent=47 // pred_check
        %p333 = pneg %p38
      $region50: #{tpu_custom_call.1} parent=47 // pred_check_branch
        %335 = sbr.rel (%p333) target = $region52
      $region51: #{tpu_custom_call.1} parent=47 // pred_region
        %s336 = smul.u32 16, %s18
        %p337 = scmp.lt.s32.totalorder %s336, 31
        %s338 = scalar_select %p337, %s336, 31
        %s339 = smul.addr %s338, 8
        %s340 = scalar_lea.vmem %s0, %s339
        %s341 = smul.u32 16, %s18
      $region52: #{tpu_custom_call.1} parent=47 // pred_fallthru
        _
      // Predicated region
      $region53: #{tpu_custom_call.1} parent=47 // pred_check
        %p342 = pneg %p64
      $region54: #{tpu_custom_call.1} parent=47 // pred_check_branch
        %344 = sbr.rel (%p342) target = $region56
      $region55: #{tpu_custom_call.1} parent=47 // pred_region
        %s345 = smul.u32 16, %s18
        %p346 = scmp.lt.s32.totalorder %s345, 31
        %s347 = scalar_select %p346, %s345, 31
        %s348 = smul.addr %s347, 8
        %s349 = scalar_lea.vmem %s1, %s348
        %s350 = smul.u32 16, %s18
      $region56: #{tpu_custom_call.1} parent=47 // pred_fallthru
        _
    $region48: #{tpu_custom_call.1} parent=5 // pred_fallthru
      _
    %p351 = scmp.le.s32.totalorder 1, %s18
    %p352 = scmp.lt.s32.totalorder %s18, 3
    %p353 = pnand %p351, %p352
    %p354 = pneg %p353
    // Predicated region
    $region57: #{tpu_custom_call.1} parent=5 // pred_check
      _
    $region58: #{tpu_custom_call.1} parent=5 // pred_check_branch
      %356 = sbr.rel (%p353) target = $region60
    $region59: #{tpu_custom_call.1} parent=5 // pred_region
      %s357 = ssub.s32 %s18, 1
      %s358 = smul.u32 16, %s23
      %p359 = scmp.lt.s32.totalorder %s358, 31
      %s360 = scalar_select %p359, %s358, 31
      %s361 = smul.addr %s360, 8
      %s362 = scalar_lea.vmem %s0, %s361
      %p363 = pneg %p44
      %p364 = pneg %p41
      %s365 = smul.u32 16, %s23
      %p366 = scmp.lt.s32.totalorder %s365, 31
      %s367 = scalar_select %p366, %s365, 31
      %s368 = smul.addr %s367, 8
      %s369 = scalar_lea.vmem %s1, %s368
      %p370 = pneg %p70
      %p371 = pneg %p67
      %p372 = pneg %p91
      %p373 = pneg %p88
      %p374 = pneg %p112
      %p375 = pneg %p109
      %p376 = pneg %p133
      %p377 = pneg %p130
      %p378 = pneg %p154
      %p379 = pneg %p151
      %p380 = pneg %p175
      %p381 = pneg %p172
      %p382 = pneg %p196
      %p383 = pneg %p193
      %p384 = pneg %p217
      %p385 = pneg %p214
      %p386 = pneg %p238
      %p387 = pneg %p235
      %p388 = pneg %p264
      %p389 = pneg %p261
      %s390 = smul.u32 16, %s23
      %p391 = scmp.lt.s32.totalorder %s390, 31
      %s392 = scalar_select %p391, %s390, 31
      %s393 = smul.addr %s392, 8
      %s394 = scalar_lea.vmem %s10, %s393
      %p395 = pneg %p290
      %p396 = pneg %p287
      %s397 = smul.u32 16, %s23
      %p398 = scmp.lt.s32.totalorder %s397, 31
      %s399 = scalar_select %p398, %s397, 31
      %s400 = smul.addr %s399, 8
      %s401 = scalar_lea.vmem %s11, %s400
      %s402 = smul.u32 16, %s23
      %p403 = scmp.lt.s32.totalorder %s402, 31
      %s404 = scalar_select %p403, %s402, 31
      %s405 = smul.addr %s404, 8
      %s406 = scalar_lea.vmem %s0, %s405
      %s407 = smul.u32 16, %s23
      %s408 = smul.u32 16, %s23
      %p409 = scmp.lt.s32.totalorder %s408, 31
      %s410 = scalar_select %p409, %s408, 31
      %s411 = smul.addr %s410, 8
      %s412 = scalar_lea.vmem %s1, %s411
      %s413 = smul.u32 16, %s23
      %s414 = smul.u32 16, %s23
      %p415 = scmp.lt.s32.totalorder %s414, 31
      %s416 = scalar_select %p415, %s414, 31
      %s417 = smul.addr %s416, 8
      %s418 = scalar_lea.vmem %s10, %s417
      %s419 = smul.u32 16, %s23
      %s420 = smul.u32 16, %s23
      %p421 = scmp.lt.s32.totalorder %s420, 31
      %s422 = scalar_select %p421, %s420, 31
      %s423 = smul.addr %s422, 8
      %s424 = scalar_lea.vmem %s11, %s423
      %s425 = smul.u32 16, %s23
      %v427 = vld [vmem:[%s406] sm:$0xff]
      %v428 = vld [vmem:[%s406 + $0x8] sm:$0xff]
      %v429 = vld [vmem:[%s406 + $0x10] sm:$0xff]
      %v430 = vld [vmem:[%s406 + $0x18] sm:$0xff]
      %v431 = vld [vmem:[%s406 + $0x20] sm:$0xff]
      %v432 = vld [vmem:[%s406 + $0x28] sm:$0xff]
      %v433 = vld [vmem:[%s406 + $0x30] sm:$0xff]
      %v434 = vld [vmem:[%s406 + $0x38] sm:$0xff]
      %v435 = vld [vmem:[%s406 + $0x40] sm:$0xff]
      %v436 = vld [vmem:[%s406 + $0x48] sm:$0xff]
      %v437 = vld [vmem:[%s406 + $0x50] sm:$0xff]
      %v438 = vld [vmem:[%s406 + $0x58] sm:$0xff]
      %v439 = vld [vmem:[%s406 + $0x60] sm:$0xff]
      %v440 = vld [vmem:[%s406 + $0x68] sm:$0xff]
      %v441 = vld [vmem:[%s406 + $0x70] sm:$0xff]
      %v442 = vld [vmem:[%s406 + $0x78] sm:$0xff]
      %v443 = vpack.c.bf16 %v428, %v427
      %v444 = vpack.c.bf16 %v430, %v429
      %v445 = vpack.c.bf16 %v432, %v431
      %v446 = vpack.c.bf16 %v434, %v433
      %v447 = vpack.c.bf16 %v436, %v435
      %v448 = vpack.c.bf16 %v438, %v437
      %v449 = vpack.c.bf16 %v440, %v439
      %v450 = vpack.c.bf16 %v442, %v441
      %v451 = vld [vmem:[%s2] sm:$0xf]
      %v452 = vld [vmem:[%s2 + $0x4] sm:$0xf]
      %v453 = vld [vmem:[%s2 + $0x8] sm:$0xf]
      %v454 = vld [vmem:[%s2 + $0xc] sm:$0xf]
      %v455 = vld [vmem:[%s2 + $0x10] sm:$0xf]
      %v456 = vld [vmem:[%s2 + $0x14] sm:$0xf]
      %v457 = vld [vmem:[%s2 + $0x18] sm:$0xf]
      %v458 = vld [vmem:[%s2 + $0x1c] sm:$0xf]
      %v459 = vld [vmem:[%s3] sm:$0x1]
      %v461 = vlaneseq
      %v462 = vshrl.u32 %v461, 7
      %v463 = vsub.s32 0, %v462
      %v464 = vrot.slane %v459, %v463
      %v474 = vunpack.c.l.b16 %v451
      %v475 = vunpack.c.l.b16 %v452
      %v476 = vunpack.c.l.b16 %v453
      %v477 = vunpack.c.l.b16 %v454
      %v478 = vunpack.c.l.b16 %v455
      %v479 = vunpack.c.l.b16 %v456
      %v480 = vunpack.c.l.b16 %v457
      %v481 = vunpack.c.l.b16 %v458
      %v482 = vpack.c.b16 %v475, %v474
      %v483 = vpack.c.b16 %v477, %v476
      %v484 = vpack.c.b16 %v479, %v478
      %v485 = vpack.c.b16 %v481, %v480
      %vm490 = vcmask 523264
      %v492 = vsel %vm490, %v443, 0
      %v495 = vsel %vm490, %v444, 0
      %v498 = vsel %vm490, %v445, 0
      %v501 = vsel %vm490, %v446, 0
      %v504 = vsel %vm490, %v447, 0
      %v507 = vsel %vm490, %v448, 0
      %v510 = vsel %vm490, %v449, 0
      %v513 = vsel %vm490, %v450, 0
      %515 = vmatprep.subr.bf16.mxu0 0
      %516 = vmatpush1.bf16.msra.mxu0 0
      %517 = vmatprep.subr.bf16.mxu0 0
      %518 = vmatpush1.bf16.msra.mxu0 0
      %519 = vmatprep.subr.bf16.mxu0 0
      %520 = vmatpush1.bf16.msra.mxu0 0
      %521 = vmatprep.subr.bf16.mxu0 0
      %522 = vmatpush1.bf16.msra.mxu0 0
      %523 = vmatprep.subr.bf16.mxu0 0
      %524 = vmatpush1.bf16.msra.mxu0 %v485
      %525 = vmatprep.subr.bf16.mxu0 0
      %526 = vmatpush1.bf16.msra.mxu0 %v484
      %527 = vmatprep.subr.bf16.mxu0 0
      %528 = vmatpush1.bf16.msra.mxu0 %v483
      %529 = vmatprep.subr.bf16.mxu0 0
      %530 = vmatpush1.bf16.msra.mxu0 %v482
      %531 = vmatprep.subr.bf16.mxu0 0
      %532 = vmatpush2.bf16.msra.mxu0 0
      %533 = vmatprep.subr.bf16.mxu0 0
      %534 = vmatpush2.bf16.msra.mxu0 0
      %535 = vmatprep.subr.bf16.mxu0 0
      %536 = vmatpush2.bf16.msra.mxu0 0
      %537 = vmatprep.subr.bf16.mxu0 0
      %538 = vmatpush2.bf16.msra.mxu0 0
      %539 = vmatprep.subr.bf16.mxu0 0
      %540 = vmatpush2.bf16.msra.mxu0 0
      %541 = vmatprep.subr.bf16.mxu0 0
      %542 = vmatpush2.bf16.msra.mxu0 0
      %543 = vmatprep.subr.bf16.mxu0 0
      %544 = vmatpush2.bf16.msra.mxu0 0
      %545 = vmatprep.subr.bf16.mxu0 0
      %546 = vmatpush2.bf16.msra.mxu0 0
      %547 = vmatprep.mubr.bf16.mxu0 0
      %548 = vmatmul.mubr.bf16.gmra.mxu0 %v492
      %v549 = vpop.f32.mrf.mxu0
      %v550 = vadd.f32 %v464, %v549
      %v551 = vpop.f32.mrf.mxu0
      %v552 = vpop.f32.mrf.mxu0
      %v553 = vadd.f32 %v464, %v552
      %v554 = vpop.f32.mrf.mxu0
      %555 = vmatprep.mubr.bf16.mxu0 0
      %556 = vmatmul.mubr.bf16.gmra.mxu0 %v495
      %v557 = vpop.f32.mrf.mxu0
      %v558 = vadd.f32 %v464, %v557
      %v559 = vpop.f32.mrf.mxu0
      %v560 = vpop.f32.mrf.mxu0
      %v561 = vadd.f32 %v464, %v560
      %v562 = vpop.f32.mrf.mxu0
      %563 = vmatprep.mubr.bf16.mxu0 0
      %564 = vmatmul.mubr.bf16.gmra.mxu0 %v498
      %v565 = vpop.f32.mrf.mxu0
      %v566 = vadd.f32 %v464, %v565
      %v567 = vpop.f32.mrf.mxu0
      %v568 = vpop.f32.mrf.mxu0
      %v569 = vadd.f32 %v464, %v568
      %v570 = vpop.f32.mrf.mxu0
      %571 = vmatprep.mubr.bf16.mxu0 0
      %572 = vmatmul.mubr.bf16.gmra.mxu0 %v501
      %v573 = vpop.f32.mrf.mxu0
      %v574 = vadd.f32 %v464, %v573
      %v575 = vpop.f32.mrf.mxu0
      %v576 = vpop.f32.mrf.mxu0
      %v577 = vadd.f32 %v464, %v576
      %v578 = vpop.f32.mrf.mxu0
      %579 = vmatprep.mubr.bf16.mxu0 0
      %580 = vmatmul.mubr.bf16.gmra.mxu0 %v504
      %v581 = vpop.f32.mrf.mxu0
      %v582 = vadd.f32 %v464, %v581
      %v583 = vpop.f32.mrf.mxu0
      %v584 = vpop.f32.mrf.mxu0
      %v585 = vadd.f32 %v464, %v584
      %v586 = vpop.f32.mrf.mxu0
      %587 = vmatprep.mubr.bf16.mxu0 0
      %588 = vmatmul.mubr.bf16.gmra.mxu0 %v507
      %v589 = vpop.f32.mrf.mxu0
      %v590 = vadd.f32 %v464, %v589
      %v591 = vpop.f32.mrf.mxu0
      %v592 = vpop.f32.mrf.mxu0
      %v593 = vadd.f32 %v464, %v592
      %v594 = vpop.f32.mrf.mxu0
      %595 = vmatprep.mubr.bf16.mxu0 0
      %596 = vmatmul.mubr.bf16.gmra.mxu0 %v510
      %v597 = vpop.f32.mrf.mxu0
      %v598 = vadd.f32 %v464, %v597
      %v599 = vpop.f32.mrf.mxu0
      %v600 = vpop.f32.mrf.mxu0
      %v601 = vadd.f32 %v464, %v600
      %v602 = vpop.f32.mrf.mxu0
      %603 = vmatprep.mubr.bf16.mxu0 0
      %604 = vmatmul.mubr.bf16.gmra.mxu0 %v513
      %v605 = vpop.f32.mrf.mxu0
      %v606 = vadd.f32 %v464, %v605
      %v607 = vpop.f32.mrf.mxu0
      %v608 = vpop.f32.mrf.mxu0
      %v609 = vadd.f32 %v464, %v608
      %v610 = vpop.f32.mrf.mxu0
      %611 = vdwg.mxu0
      %v612 = vmax.f32 %v550, 0.0
      %v613 = vmax.f32 %v553, 0.0
      %v614 = vmax.f32 %v558, 0.0
      %v615 = vmax.f32 %v561, 0.0
      %v616 = vmax.f32 %v566, 0.0
      %v617 = vmax.f32 %v569, 0.0
      %v618 = vmax.f32 %v574, 0.0
      %v619 = vmax.f32 %v577, 0.0
      %v620 = vmax.f32 %v582, 0.0
      %v621 = vmax.f32 %v585, 0.0
      %v622 = vmax.f32 %v590, 0.0
      %v623 = vmax.f32 %v593, 0.0
      %v624 = vmax.f32 %v598, 0.0
      %v625 = vmax.f32 %v601, 0.0
      %v626 = vmax.f32 %v606, 0.0
      %v627 = vmax.f32 %v609, 0.0
      %v628 = vpack.c.bf16 %v613, %v612
      %v629 = vpack.c.bf16 %v615, %v614
      %v630 = vpack.c.bf16 %v617, %v616
      %v631 = vpack.c.bf16 %v619, %v618
      %v632 = vpack.c.bf16 %v621, %v620
      %v633 = vpack.c.bf16 %v623, %v622
      %v634 = vpack.c.bf16 %v625, %v624
      %v635 = vpack.c.bf16 %v627, %v626
      %v636 = vld [vmem:[%s4] sm:$0xf]
      %v637 = vld [vmem:[%s4 + $0x4] sm:$0xf]
      %v638 = vld [vmem:[%s4 + $0x8] sm:$0xf]
      %v639 = vld [vmem:[%s4 + $0xc] sm:$0xf]
      %v640 = vld [vmem:[%s4 + $0x10] sm:$0xf]
      %v641 = vld [vmem:[%s4 + $0x14] sm:$0xf]
      %v642 = vld [vmem:[%s4 + $0x18] sm:$0xf]
      %v643 = vld [vmem:[%s4 + $0x1c] sm:$0xf]
      %v644 = vld [vmem:[%s5] sm:$0x1]
      %v646 = vlaneseq
      %v647 = vshrl.u32 %v646, 7
      %v648 = vsub.s32 0, %v647
      %v649 = vrot.slane %v644, %v648
      %v659 = vunpack.c.l.b16 %v636
      %v660 = vunpack.c.l.b16 %v637
      %v661 = vunpack.c.l.b16 %v638
      %v662 = vunpack.c.l.b16 %v639
      %v663 = vunpack.c.l.b16 %v640
      %v664 = vunpack.c.l.b16 %v641
      %v665 = vunpack.c.l.b16 %v642
      %v666 = vunpack.c.l.b16 %v643
      %v667 = vpack.c.b16 %v660, %v659
      %v668 = vpack.c.b16 %v662, %v661
      %v669 = vpack.c.b16 %v664, %v663
      %v670 = vpack.c.b16 %v666, %v665
      %v676 = vsel %vm490, %v628, 0
      %v679 = vsel %vm490, %v629, 0
      %v682 = vsel %vm490, %v630, 0
      %v685 = vsel %vm490, %v631, 0
      %v688 = vsel %vm490, %v632, 0
      %v691 = vsel %vm490, %v633, 0
      %v694 = vsel %vm490, %v634, 0
      %v697 = vsel %vm490, %v635, 0
      %699 = vmatprep.subr.bf16.mxu0 0
      %700 = vmatpush1.bf16.msra.mxu0 0
      %701 = vmatprep.subr.bf16.mxu0 0
      %702 = vmatpush1.bf16.msra.mxu0 0
      %703 = vmatprep.subr.bf16.mxu0 0
      %704 = vmatpush1.bf16.msra.mxu0 0
      %705 = vmatprep.subr.bf16.mxu0 0
      %706 = vmatpush1.bf16.msra.mxu0 0
      %707 = vmatprep.subr.bf16.mxu0 0
      %708 = vmatpush1.bf16.msra.mxu0 %v670
      %709 = vmatprep.subr.bf16.mxu0 0
      %710 = vmatpush1.bf16.msra.mxu0 %v669
      %711 = vmatprep.subr.bf16.mxu0 0
      %712 = vmatpush1.bf16.msra.mxu0 %v668
      %713 = vmatprep.subr.bf16.mxu0 0
      %714 = vmatpush1.bf16.msra.mxu0 %v667
      %715 = vmatprep.subr.bf16.mxu0 0
      %716 = vmatpush2.bf16.msra.mxu0 0
      %717 = vmatprep.subr.bf16.mxu0 0
      %718 = vmatpush2.bf16.msra.mxu0 0
      %719 = vmatprep.subr.bf16.mxu0 0
      %720 = vmatpush2.bf16.msra.mxu0 0
      %721 = vmatprep.subr.bf16.mxu0 0
      %722 = vmatpush2.bf16.msra.mxu0 0
      %723 = vmatprep.subr.bf16.mxu0 0
      %724 = vmatpush2.bf16.msra.mxu0 0
      %725 = vmatprep.subr.bf16.mxu0 0
      %726 = vmatpush2.bf16.msra.mxu0 0
      %727 = vmatprep.subr.bf16.mxu0 0
      %728 = vmatpush2.bf16.msra.mxu0 0
      %729 = vmatprep.subr.bf16.mxu0 0
      %730 = vmatpush2.bf16.msra.mxu0 0
      %731 = vmatprep.mubr.bf16.mxu0 0
      %732 = vmatmul.mubr.bf16.gmra.mxu0 %v676
      %v733 = vpop.f32.mrf.mxu0
      %v734 = vadd.f32 %v649, %v733
      %v735 = vpop.f32.mrf.mxu0
      %v736 = vpop.f32.mrf.mxu0
      %v737 = vadd.f32 %v649, %v736
      %v738 = vpop.f32.mrf.mxu0
      %739 = vmatprep.mubr.bf16.mxu0 0
      %740 = vmatmul.mubr.bf16.gmra.mxu0 %v679
      %v741 = vpop.f32.mrf.mxu0
      %v742 = vadd.f32 %v649, %v741
      %v743 = vpop.f32.mrf.mxu0
      %v744 = vpop.f32.mrf.mxu0
      %v745 = vadd.f32 %v649, %v744
      %v746 = vpop.f32.mrf.mxu0
      %747 = vmatprep.mubr.bf16.mxu0 0
      %748 = vmatmul.mubr.bf16.gmra.mxu0 %v682
      %v749 = vpop.f32.mrf.mxu0
      %v750 = vadd.f32 %v649, %v749
      %v751 = vpop.f32.mrf.mxu0
      %v752 = vpop.f32.mrf.mxu0
      %v753 = vadd.f32 %v649, %v752
      %v754 = vpop.f32.mrf.mxu0
      %755 = vmatprep.mubr.bf16.mxu0 0
      %756 = vmatmul.mubr.bf16.gmra.mxu0 %v685
      %v757 = vpop.f32.mrf.mxu0
      %v758 = vadd.f32 %v649, %v757
      %v759 = vpop.f32.mrf.mxu0
      %v760 = vpop.f32.mrf.mxu0
      %v761 = vadd.f32 %v649, %v760
      %v762 = vpop.f32.mrf.mxu0
      %763 = vmatprep.mubr.bf16.mxu0 0
      %764 = vmatmul.mubr.bf16.gmra.mxu0 %v688
      %v765 = vpop.f32.mrf.mxu0
      %v766 = vadd.f32 %v649, %v765
      %v767 = vpop.f32.mrf.mxu0
      %v768 = vpop.f32.mrf.mxu0
      %v769 = vadd.f32 %v649, %v768
      %v770 = vpop.f32.mrf.mxu0
      %771 = vmatprep.mubr.bf16.mxu0 0
      %772 = vmatmul.mubr.bf16.gmra.mxu0 %v691
      %v773 = vpop.f32.mrf.mxu0
      %v774 = vadd.f32 %v649, %v773
      %v775 = vpop.f32.mrf.mxu0
      %v776 = vpop.f32.mrf.mxu0
      %v777 = vadd.f32 %v649, %v776
      %v778 = vpop.f32.mrf.mxu0
      %779 = vmatprep.mubr.bf16.mxu0 0
      %780 = vmatmul.mubr.bf16.gmra.mxu0 %v694
      %v781 = vpop.f32.mrf.mxu0
      %v782 = vadd.f32 %v649, %v781
      %v783 = vpop.f32.mrf.mxu0
      %v784 = vpop.f32.mrf.mxu0
      %v785 = vadd.f32 %v649, %v784
      %v786 = vpop.f32.mrf.mxu0
      %787 = vmatprep.mubr.bf16.mxu0 0
      %788 = vmatmul.mubr.bf16.gmra.mxu0 %v697
      %v789 = vpop.f32.mrf.mxu0
      %v790 = vadd.f32 %v649, %v789
      %v791 = vpop.f32.mrf.mxu0
      %v792 = vpop.f32.mrf.mxu0
      %v793 = vadd.f32 %v649, %v792
      %v794 = vpop.f32.mrf.mxu0
      %795 = vdwg.mxu0
      %v796 = vld [vmem:[%s412] sm:$0xff]
      %v797 = vld [vmem:[%s412 + $0x8] sm:$0xff]
      %v798 = vld [vmem:[%s412 + $0x10] sm:$0xff]
      %v799 = vld [vmem:[%s412 + $0x18] sm:$0xff]
      %v800 = vld [vmem:[%s412 + $0x20] sm:$0xff]
      %v801 = vld [vmem:[%s412 + $0x28] sm:$0xff]
      %v802 = vld [vmem:[%s412 + $0x30] sm:$0xff]
      %v803 = vld [vmem:[%s412 + $0x38] sm:$0xff]
      %v804 = vld [vmem:[%s412 + $0x40] sm:$0xff]
      %v805 = vld [vmem:[%s412 + $0x48] sm:$0xff]
      %v806 = vld [vmem:[%s412 + $0x50] sm:$0xff]
      %v807 = vld [vmem:[%s412 + $0x58] sm:$0xff]
      %v808 = vld [vmem:[%s412 + $0x60] sm:$0xff]
      %v809 = vld [vmem:[%s412 + $0x68] sm:$0xff]
      %v810 = vld [vmem:[%s412 + $0x70] sm:$0xff]
      %v811 = vld [vmem:[%s412 + $0x78] sm:$0xff]
      %v812 = vmul.f32 %v734, 0.5
      %v813 = vmul.f32 %v737, 0.5
      %v814 = vmul.f32 %v742, 0.5
      %v815 = vmul.f32 %v745, 0.5
      %v816 = vmul.f32 %v750, 0.5
      %v817 = vmul.f32 %v753, 0.5
      %v818 = vmul.f32 %v758, 0.5
      %v819 = vmul.f32 %v761, 0.5
      %v820 = vmul.f32 %v766, 0.5
      %v821 = vmul.f32 %v769, 0.5
      %v822 = vmul.f32 %v774, 0.5
      %v823 = vmul.f32 %v777, 0.5
      %v824 = vmul.f32 %v782, 0.5
      %v825 = vmul.f32 %v785, 0.5
      %v826 = vmul.f32 %v790, 0.5
      %v827 = vmul.f32 %v793, 0.5
      %v828 = vmul.f32 %v812, 1.442695
      %v829 = vpow.pop %v828
      %v830 = vmul.f32 %v813, 1.442695
      %v831 = vpow.pop %v830
      %v832 = vmul.f32 %v814, 1.442695
      %v833 = vpow.pop %v832
      %v834 = vmul.f32 %v815, 1.442695
      %v835 = vpow.pop %v834
      %v836 = vmul.f32 %v816, 1.442695
      %v837 = vpow.pop %v836
      %v838 = vmul.f32 %v817, 1.442695
      %v839 = vpow.pop %v838
      %v840 = vmul.f32 %v818, 1.442695
      %v841 = vpow.pop %v840
      %v842 = vmul.f32 %v819, 1.442695
      %v843 = vpow.pop %v842
      %v844 = vmul.f32 %v820, 1.442695
      %v845 = vpow.pop %v844
      %v846 = vmul.f32 %v821, 1.442695
      %v847 = vpow.pop %v846
      %v848 = vmul.f32 %v822, 1.442695
      %v849 = vpow.pop %v848
      %v850 = vmul.f32 %v823, 1.442695
      %v851 = vpow.pop %v850
      %v852 = vmul.f32 %v824, 1.442695
      %v853 = vpow.pop %v852
      %v854 = vmul.f32 %v825, 1.442695
      %v855 = vpow.pop %v854
      %v856 = vmul.f32 %v826, 1.442695
      %v857 = vpow.pop %v856
      %v858 = vmul.f32 %v827, 1.442695
      %v859 = vpow.pop %v858
      %876 = vrot.lane.b32.xlu0 %v829, 112
      %v877 = vpop.permute.xlu0 %876
      %878 = vrot.lane.b32.xlu0 %v831, 112
      %v879 = vpop.permute.xlu0 %878
      %880 = vrot.lane.b32.xlu0 %v833, 112
      %v881 = vpop.permute.xlu0 %880
      %882 = vrot.lane.b32.xlu0 %v835, 112
      %v883 = vpop.permute.xlu0 %882
      %884 = vrot.lane.b32.xlu0 %v837, 112
      %v885 = vpop.permute.xlu0 %884
      %886 = vrot.lane.b32.xlu0 %v839, 112
      %v887 = vpop.permute.xlu0 %886
      %888 = vrot.lane.b32.xlu0 %v841, 112
      %v889 = vpop.permute.xlu0 %888
      %890 = vrot.lane.b32.xlu0 %v843, 112
      %v891 = vpop.permute.xlu0 %890
      %892 = vrot.lane.b32.xlu0 %v845, 112
      %v893 = vpop.permute.xlu0 %892
      %894 = vrot.lane.b32.xlu0 %v847, 112
      %v895 = vpop.permute.xlu0 %894
      %896 = vrot.lane.b32.xlu0 %v849, 112
      %v897 = vpop.permute.xlu0 %896
      %898 = vrot.lane.b32.xlu0 %v851, 112
      %v899 = vpop.permute.xlu0 %898
      %900 = vrot.lane.b32.xlu0 %v853, 112
      %v901 = vpop.permute.xlu0 %900
      %902 = vrot.lane.b32.xlu0 %v855, 112
      %v903 = vpop.permute.xlu0 %902
      %904 = vrot.lane.b32.xlu0 %v857, 112
      %v905 = vpop.permute.xlu0 %904
      %906 = vrot.lane.b32.xlu0 %v859, 112
      %v907 = vpop.permute.xlu0 %906
      %v924 = vmul.f32 %v796, %v877
      %v925 = vmul.f32 %v797, %v879
      %v926 = vmul.f32 %v798, %v881
      %v927 = vmul.f32 %v799, %v883
      %v928 = vmul.f32 %v800, %v885
      %v929 = vmul.f32 %v801, %v887
      %v930 = vmul.f32 %v802, %v889
      %v931 = vmul.f32 %v803, %v891
      %v932 = vmul.f32 %v804, %v893
      %v933 = vmul.f32 %v805, %v895
      %v934 = vmul.f32 %v806, %v897
      %v935 = vmul.f32 %v807, %v899
      %v936 = vmul.f32 %v808, %v901
      %v937 = vmul.f32 %v809, %v903
      %v938 = vmul.f32 %v810, %v905
      %v939 = vmul.f32 %v811, %v907
      %v940 = vadd.f32 %v734, %v924
      %v941 = vadd.f32 %v737, %v925
      %v942 = vadd.f32 %v742, %v926
      %v943 = vadd.f32 %v745, %v927
      %v944 = vadd.f32 %v750, %v928
      %v945 = vadd.f32 %v753, %v929
      %v946 = vadd.f32 %v758, %v930
      %v947 = vadd.f32 %v761, %v931
      %v948 = vadd.f32 %v766, %v932
      %v949 = vadd.f32 %v769, %v933
      %v950 = vadd.f32 %v774, %v934
      %v951 = vadd.f32 %v777, %v935
      %v952 = vadd.f32 %v782, %v936
      %v953 = vadd.f32 %v785, %v937
      %v954 = vadd.f32 %v790, %v938
      %v955 = vadd.f32 %v793, %v939
      %v956 = vpack.c.bf16 %v941, %v940
      %v957 = vpack.c.bf16 %v943, %v942
      %v958 = vpack.c.bf16 %v945, %v944
      %v959 = vpack.c.bf16 %v947, %v946
      %v960 = vpack.c.bf16 %v949, %v948
      %v961 = vpack.c.bf16 %v951, %v950
      %v962 = vpack.c.bf16 %v953, %v952
      %v963 = vpack.c.bf16 %v955, %v954
      %v964 = vld [vmem:[%s6] sm:$0xf]
      %v965 = vld [vmem:[%s6 + $0x4] sm:$0xf]
      %v966 = vld [vmem:[%s7] sm:$0x1]
      %v968 = vlaneseq
      %v969 = vshrl.u32 %v968, 7
      %v970 = vsub.s32 0, %v969
      %v971 = vrot.slane %v966, %v970
      %v975 = vunpack.c.l.b16 %v964
      %v976 = vunpack.c.l.b16 %v965
      %v977 = vpack.c.b16 %v976, %v975
      %vm979 = vcmask 130048
      %v981 = vsel %vm979, %v956, 0
      %v984 = vsel %vm979, %v957, 0
      %v987 = vsel %vm979, %v958, 0
      %v990 = vsel %vm979, %v959, 0
      %v993 = vsel %vm979, %v960, 0
      %v996 = vsel %vm979, %v961, 0
      %v999 = vsel %vm979, %v962, 0
      %v1002 = vsel %vm979, %v963, 0
      %1004 = vmatprep.subr.bf16.mxu0 0
      %1005 = vmatpush1.bf16.msra.mxu0 0
      %1006 = vmatprep.subr.bf16.mxu0 0
      %1007 = vmatpush1.bf16.msra.mxu0 0
      %1008 = vmatprep.subr.bf16.mxu0 0
      %1009 = vmatpush1.bf16.msra.mxu0 0
      %1010 = vmatprep.subr.bf16.mxu0 0
      %1011 = vmatpush1.bf16.msra.mxu0 0
      %1012 = vmatprep.subr.bf16.mxu0 0
      %1013 = vmatpush1.bf16.msra.mxu0 0
      %1014 = vmatprep.subr.bf16.mxu0 0
      %1015 = vmatpush1.bf16.msra.mxu0 0
      %1016 = vmatprep.subr.bf16.mxu0 0
      %1017 = vmatpush1.bf16.msra.mxu0 0
      %1018 = vmatprep.subr.bf16.mxu0 0
      %1019 = vmatpush1.bf16.msra.mxu0 %v977
      %1020 = vmatprep.subr.bf16.mxu0 0
      %1021 = vmatpush2.bf16.msra.mxu0 0
      %1022 = vmatprep.subr.bf16.mxu0 0
      %1023 = vmatpush2.bf16.msra.mxu0 0
      %1024 = vmatprep.subr.bf16.mxu0 0
      %1025 = vmatpush2.bf16.msra.mxu0 0
      %1026 = vmatprep.subr.bf16.mxu0 0
      %1027 = vmatpush2.bf16.msra.mxu0 0
      %1028 = vmatprep.subr.bf16.mxu0 0
      %1029 = vmatpush2.bf16.msra.mxu0 0
      %1030 = vmatprep.subr.bf16.mxu0 0
      %1031 = vmatpush2.bf16.msra.mxu0 0
      %1032 = vmatprep.subr.bf16.mxu0 0
      %1033 = vmatpush2.bf16.msra.mxu0 0
      %1034 = vmatprep.subr.bf16.mxu0 0
      %1035 = vmatpush2.bf16.msra.mxu0 0
      %1036 = vmatprep.mubr.bf16.mxu0 0
      %1037 = vmatmul.mubr.bf16.gmra.mxu0 %v981
      %v1038 = vpop.f32.mrf.mxu0
      %v1039 = vadd.f32 %v971, %v1038
      %v1040 = vpop.f32.mrf.mxu0
      %v1041 = vpop.f32.mrf.mxu0
      %v1042 = vadd.f32 %v971, %v1041
      %v1043 = vpop.f32.mrf.mxu0
      %1044 = vmatprep.mubr.bf16.mxu0 0
      %1045 = vmatmul.mubr.bf16.gmra.mxu0 %v984
      %v1046 = vpop.f32.mrf.mxu0
      %v1047 = vadd.f32 %v971, %v1046
      %v1048 = vpop.f32.mrf.mxu0
      %v1049 = vpop.f32.mrf.mxu0
      %v1050 = vadd.f32 %v971, %v1049
      %v1051 = vpop.f32.mrf.mxu0
      %1052 = vmatprep.mubr.bf16.mxu0 0
      %1053 = vmatmul.mubr.bf16.gmra.mxu0 %v987
      %v1054 = vpop.f32.mrf.mxu0
      %v1055 = vadd.f32 %v971, %v1054
      %v1056 = vpop.f32.mrf.mxu0
      %v1057 = vpop.f32.mrf.mxu0
      %v1058 = vadd.f32 %v971, %v1057
      %v1059 = vpop.f32.mrf.mxu0
      %1060 = vmatprep.mubr.bf16.mxu0 0
      %1061 = vmatmul.mubr.bf16.gmra.mxu0 %v990
      %v1062 = vpop.f32.mrf.mxu0
      %v1063 = vadd.f32 %v971, %v1062
      %v1064 = vpop.f32.mrf.mxu0
      %v1065 = vpop.f32.mrf.mxu0
      %v1066 = vadd.f32 %v971, %v1065
      %v1067 = vpop.f32.mrf.mxu0
      %1068 = vmatprep.mubr.bf16.mxu0 0
      %1069 = vmatmul.mubr.bf16.gmra.mxu0 %v993
      %v1070 = vpop.f32.mrf.mxu0
      %v1071 = vadd.f32 %v971, %v1070
      %v1072 = vpop.f32.mrf.mxu0
      %v1073 = vpop.f32.mrf.mxu0
      %v1074 = vadd.f32 %v971, %v1073
      %v1075 = vpop.f32.mrf.mxu0
      %1076 = vmatprep.mubr.bf16.mxu0 0
      %1077 = vmatmul.mubr.bf16.gmra.mxu0 %v996
      %v1078 = vpop.f32.mrf.mxu0
      %v1079 = vadd.f32 %v971, %v1078
      %v1080 = vpop.f32.mrf.mxu0
      %v1081 = vpop.f32.mrf.mxu0
      %v1082 = vadd.f32 %v971, %v1081
      %v1083 = vpop.f32.mrf.mxu0
      %1084 = vmatprep.mubr.bf16.mxu0 0
      %1085 = vmatmul.mubr.bf16.gmra.mxu0 %v999
      %v1086 = vpop.f32.mrf.mxu0
      %v1087 = vadd.f32 %v971, %v1086
      %v1088 = vpop.f32.mrf.mxu0
      %v1089 = vpop.f32.mrf.mxu0
      %v1090 = vadd.f32 %v971, %v1089
      %v1091 = vpop.f32.mrf.mxu0
      %1092 = vmatprep.mubr.bf16.mxu0 0
      %1093 = vmatmul.mubr.bf16.gmra.mxu0 %v1002
      %v1094 = vpop.f32.mrf.mxu0
      %v1095 = vadd.f32 %v971, %v1094
      %v1096 = vpop.f32.mrf.mxu0
      %v1097 = vpop.f32.mrf.mxu0
      %v1098 = vadd.f32 %v971, %v1097
      %v1099 = vpop.f32.mrf.mxu0
      %1100 = vdwg.mxu0
      %v1101 = vmax.f32 %v1039, 0.0
      %v1102 = vmax.f32 %v1042, 0.0
      %v1103 = vmax.f32 %v1047, 0.0
      %v1104 = vmax.f32 %v1050, 0.0
      %v1105 = vmax.f32 %v1055, 0.0
      %v1106 = vmax.f32 %v1058, 0.0
      %v1107 = vmax.f32 %v1063, 0.0
      %v1108 = vmax.f32 %v1066, 0.0
      %v1109 = vmax.f32 %v1071, 0.0
      %v1110 = vmax.f32 %v1074, 0.0
      %v1111 = vmax.f32 %v1079, 0.0
      %v1112 = vmax.f32 %v1082, 0.0
      %v1113 = vmax.f32 %v1087, 0.0
      %v1114 = vmax.f32 %v1090, 0.0
      %v1115 = vmax.f32 %v1095, 0.0
      %v1116 = vmax.f32 %v1098, 0.0
      %v1117 = vpack.c.bf16 %v1102, %v1101
      %v1118 = vpack.c.bf16 %v1104, %v1103
      %v1119 = vpack.c.bf16 %v1106, %v1105
      %v1120 = vpack.c.bf16 %v1108, %v1107
      %v1121 = vpack.c.bf16 %v1110, %v1109
      %v1122 = vpack.c.bf16 %v1112, %v1111
      %v1123 = vpack.c.bf16 %v1114, %v1113
      %v1124 = vpack.c.bf16 %v1116, %v1115
      %v1125 = vld [vmem:[%s8] sm:$0xf]
      %v1126 = vld [vmem:[%s8 + $0x4] sm:$0xf]
      %v1127 = vld [vmem:[%s8 + $0x8] sm:$0xf]
      %v1128 = vld [vmem:[%s8 + $0xc] sm:$0xf]
      %v1129 = vld [vmem:[%s8 + $0x10] sm:$0xf]
      %v1130 = vld [vmem:[%s8 + $0x14] sm:$0xf]
      %v1131 = vld [vmem:[%s8 + $0x18] sm:$0xf]
      %v1132 = vld [vmem:[%s8 + $0x1c] sm:$0xf]
      %v1133 = vld [vmem:[%s9] sm:$0x1]
      %v1135 = vlaneseq
      %v1136 = vshrl.u32 %v1135, 7
      %v1137 = vsub.s32 0, %v1136
      %v1138 = vrot.slane %v1133, %v1137
      %v1148 = vunpack.c.l.b16 %v1125
      %v1149 = vunpack.c.l.b16 %v1126
      %v1150 = vunpack.c.l.b16 %v1127
      %v1151 = vunpack.c.l.b16 %v1128
      %v1152 = vunpack.c.l.b16 %v1129
      %v1153 = vunpack.c.l.b16 %v1130
      %v1154 = vunpack.c.l.b16 %v1131
      %v1155 = vunpack.c.l.b16 %v1132
      %v1156 = vpack.c.b16 %v1149, %v1148
      %v1157 = vpack.c.b16 %v1151, %v1150
      %v1158 = vpack.c.b16 %v1153, %v1152
      %v1159 = vpack.c.b16 %v1155, %v1154
      %v1165 = vsel %vm490, %v1117, 0
      %v1168 = vsel %vm490, %v1118, 0
      %v1171 = vsel %vm490, %v1119, 0
      %v1174 = vsel %vm490, %v1120, 0
      %v1177 = vsel %vm490, %v1121, 0
      %v1180 = vsel %vm490, %v1122, 0
      %v1183 = vsel %vm490, %v1123, 0
      %v1186 = vsel %vm490, %v1124, 0
      %1188 = vmatprep.subr.bf16.mxu0 0
      %1189 = vmatpush1.bf16.msra.mxu0 0
      %1190 = vmatprep.subr.bf16.mxu0 0
      %1191 = vmatpush1.bf16.msra.mxu0 0
      %1192 = vmatprep.subr.bf16.mxu0 0
      %1193 = vmatpush1.bf16.msra.mxu0 0
      %1194 = vmatprep.subr.bf16.mxu0 0
      %1195 = vmatpush1.bf16.msra.mxu0 0
      %1196 = vmatprep.subr.bf16.mxu0 0
      %1197 = vmatpush1.bf16.msra.mxu0 %v1159
      %1198 = vmatprep.subr.bf16.mxu0 0
      %1199 = vmatpush1.bf16.msra.mxu0 %v1158
      %1200 = vmatprep.subr.bf16.mxu0 0
      %1201 = vmatpush1.bf16.msra.mxu0 %v1157
      %1202 = vmatprep.subr.bf16.mxu0 0
      %1203 = vmatpush1.bf16.msra.mxu0 %v1156
      %1204 = vmatprep.subr.bf16.mxu0 0
      %1205 = vmatpush2.bf16.msra.mxu0 0
      %1206 = vmatprep.subr.bf16.mxu0 0
      %1207 = vmatpush2.bf16.msra.mxu0 0
      %1208 = vmatprep.subr.bf16.mxu0 0
      %1209 = vmatpush2.bf16.msra.mxu0 0
      %1210 = vmatprep.subr.bf16.mxu0 0
      %1211 = vmatpush2.bf16.msra.mxu0 0
      %1212 = vmatprep.subr.bf16.mxu0 0
      %1213 = vmatpush2.bf16.msra.mxu0 0
      %1214 = vmatprep.subr.bf16.mxu0 0
      %1215 = vmatpush2.bf16.msra.mxu0 0
      %1216 = vmatprep.subr.bf16.mxu0 0
      %1217 = vmatpush2.bf16.msra.mxu0 0
      %1218 = vmatprep.subr.bf16.mxu0 0
      %1219 = vmatpush2.bf16.msra.mxu0 0
      %1220 = vmatprep.mubr.bf16.mxu0 0
      %1221 = vmatmul.mubr.bf16.gmra.mxu0 %v1165
      %v1222 = vpop.f32.mrf.mxu0
      %v1223 = vadd.f32 %v1138, %v1222
      %v1224 = vpop.f32.mrf.mxu0
      %v1225 = vpop.f32.mrf.mxu0
      %v1226 = vadd.f32 %v1138, %v1225
      %v1227 = vpop.f32.mrf.mxu0
      %1228 = vmatprep.mubr.bf16.mxu0 0
      %1229 = vmatmul.mubr.bf16.gmra.mxu0 %v1168
      %v1230 = vpop.f32.mrf.mxu0
      %v1231 = vadd.f32 %v1138, %v1230
      %v1232 = vpop.f32.mrf.mxu0
      %v1233 = vpop.f32.mrf.mxu0
      %v1234 = vadd.f32 %v1138, %v1233
      %v1235 = vpop.f32.mrf.mxu0
      %1236 = vmatprep.mubr.bf16.mxu0 0
      %1237 = vmatmul.mubr.bf16.gmra.mxu0 %v1171
      %v1238 = vpop.f32.mrf.mxu0
      %v1239 = vadd.f32 %v1138, %v1238
      %v1240 = vpop.f32.mrf.mxu0
      %v1241 = vpop.f32.mrf.mxu0
      %v1242 = vadd.f32 %v1138, %v1241
      %v1243 = vpop.f32.mrf.mxu0
      %1244 = vmatprep.mubr.bf16.mxu0 0
      %1245 = vmatmul.mubr.bf16.gmra.mxu0 %v1174
      %v1246 = vpop.f32.mrf.mxu0
      %v1247 = vadd.f32 %v1138, %v1246
      %v1248 = vpop.f32.mrf.mxu0
      %v1249 = vpop.f32.mrf.mxu0
      %v1250 = vadd.f32 %v1138, %v1249
      %v1251 = vpop.f32.mrf.mxu0
      %1252 = vmatprep.mubr.bf16.mxu0 0
      %1253 = vmatmul.mubr.bf16.gmra.mxu0 %v1177
      %v1254 = vpop.f32.mrf.mxu0
      %v1255 = vadd.f32 %v1138, %v1254
      %v1256 = vpop.f32.mrf.mxu0
      %v1257 = vpop.f32.mrf.mxu0
      %v1258 = vadd.f32 %v1138, %v1257
      %v1259 = vpop.f32.mrf.mxu0
      %1260 = vmatprep.mubr.bf16.mxu0 0
      %1261 = vmatmul.mubr.bf16.gmra.mxu0 %v1180
      %v1262 = vpop.f32.mrf.mxu0
      %v1263 = vadd.f32 %v1138, %v1262
      %v1264 = vpop.f32.mrf.mxu0
      %v1265 = vpop.f32.mrf.mxu0
      %v1266 = vadd.f32 %v1138, %v1265
      %v1267 = vpop.f32.mrf.mxu0
      %1268 = vmatprep.mubr.bf16.mxu0 0
      %1269 = vmatmul.mubr.bf16.gmra.mxu0 %v1183
      %v1270 = vpop.f32.mrf.mxu0
      %v1271 = vadd.f32 %v1138, %v1270
      %v1272 = vpop.f32.mrf.mxu0
      %v1273 = vpop.f32.mrf.mxu0
      %v1274 = vadd.f32 %v1138, %v1273
      %v1275 = vpop.f32.mrf.mxu0
      %1276 = vmatprep.mubr.bf16.mxu0 0
      %1277 = vmatmul.mubr.bf16.gmra.mxu0 %v1186
      %v1278 = vpop.f32.mrf.mxu0
      %v1279 = vadd.f32 %v1138, %v1278
      %v1280 = vpop.f32.mrf.mxu0
      %v1281 = vpop.f32.mrf.mxu0
      %v1282 = vadd.f32 %v1138, %v1281
      %v1283 = vpop.f32.mrf.mxu0
      %1284 = vdwg.mxu0
      %v1285 = vxor.u32 %v1223, 2147483648
      %v1286 = vxor.u32 %v1226, 2147483648
      %v1287 = vxor.u32 %v1231, 2147483648
      %v1288 = vxor.u32 %v1234, 2147483648
      %v1289 = vxor.u32 %v1239, 2147483648
      %v1290 = vxor.u32 %v1242, 2147483648
      %v1291 = vxor.u32 %v1247, 2147483648
      %v1292 = vxor.u32 %v1250, 2147483648
      %v1293 = vxor.u32 %v1255, 2147483648
      %v1294 = vxor.u32 %v1258, 2147483648
      %v1295 = vxor.u32 %v1263, 2147483648
      %v1296 = vxor.u32 %v1266, 2147483648
      %v1297 = vxor.u32 %v1271, 2147483648
      %v1298 = vxor.u32 %v1274, 2147483648
      %v1299 = vxor.u32 %v1279, 2147483648
      %v1300 = vxor.u32 %v1282, 2147483648
      %v1301 = vmul.f32 %v1285, 1.442695
      %v1302 = vpow.pop %v1301
      %v1303 = vmul.f32 %v1286, 1.442695
      %v1304 = vpow.pop %v1303
      %v1305 = vmul.f32 %v1287, 1.442695
      %v1306 = vpow.pop %v1305
      %v1307 = vmul.f32 %v1288, 1.442695
      %v1308 = vpow.pop %v1307
      %v1309 = vmul.f32 %v1289, 1.442695
      %v1310 = vpow.pop %v1309
      %v1311 = vmul.f32 %v1290, 1.442695
      %v1312 = vpow.pop %v1311
      %v1313 = vmul.f32 %v1291, 1.442695
      %v1314 = vpow.pop %v1313
      %v1315 = vmul.f32 %v1292, 1.442695
      %v1316 = vpow.pop %v1315
      %v1317 = vmul.f32 %v1293, 1.442695
      %v1318 = vpow.pop %v1317
      %v1319 = vmul.f32 %v1294, 1.442695
      %v1320 = vpow.pop %v1319
      %v1321 = vmul.f32 %v1295, 1.442695
      %v1322 = vpow.pop %v1321
      %v1323 = vmul.f32 %v1296, 1.442695
      %v1324 = vpow.pop %v1323
      %v1325 = vmul.f32 %v1297, 1.442695
      %v1326 = vpow.pop %v1325
      %v1327 = vmul.f32 %v1298, 1.442695
      %v1328 = vpow.pop %v1327
      %v1329 = vmul.f32 %v1299, 1.442695
      %v1330 = vpow.pop %v1329
      %v1331 = vmul.f32 %v1300, 1.442695
      %v1332 = vpow.pop %v1331
      %v1333 = vadd.f32 %v1302, 1.0
      %v1334 = vadd.f32 %v1304, 1.0
      %v1335 = vadd.f32 %v1306, 1.0
      %v1336 = vadd.f32 %v1308, 1.0
      %v1337 = vadd.f32 %v1310, 1.0
      %v1338 = vadd.f32 %v1312, 1.0
      %v1339 = vadd.f32 %v1314, 1.0
      %v1340 = vadd.f32 %v1316, 1.0
      %v1341 = vadd.f32 %v1318, 1.0
      %v1342 = vadd.f32 %v1320, 1.0
      %v1343 = vadd.f32 %v1322, 1.0
      %v1344 = vadd.f32 %v1324, 1.0
      %v1345 = vadd.f32 %v1326, 1.0
      %v1346 = vadd.f32 %v1328, 1.0
      %v1347 = vadd.f32 %v1330, 1.0
      %v1348 = vadd.f32 %v1332, 1.0
      %v1349 = vrcp.pop %v1333
      %v1350 = vmul.f32 1.0, %v1349
      %v1351 = vrcp.pop %v1334
      %v1352 = vmul.f32 1.0, %v1351
      %v1353 = vrcp.pop %v1335
      %v1354 = vmul.f32 1.0, %v1353
      %v1355 = vrcp.pop %v1336
      %v1356 = vmul.f32 1.0, %v1355
      %v1357 = vrcp.pop %v1337
      %v1358 = vmul.f32 1.0, %v1357
      %v1359 = vrcp.pop %v1338
      %v1360 = vmul.f32 1.0, %v1359
      %v1361 = vrcp.pop %v1339
      %v1362 = vmul.f32 1.0, %v1361
      %v1363 = vrcp.pop %v1340
      %v1364 = vmul.f32 1.0, %v1363
      %v1365 = vrcp.pop %v1341
      %v1366 = vmul.f32 1.0, %v1365
      %v1367 = vrcp.pop %v1342
      %v1368 = vmul.f32 1.0, %v1367
      %v1369 = vrcp.pop %v1343
      %v1370 = vmul.f32 1.0, %v1369
      %v1371 = vrcp.pop %v1344
      %v1372 = vmul.f32 1.0, %v1371
      %v1373 = vrcp.pop %v1345
      %v1374 = vmul.f32 1.0, %v1373
      %v1375 = vrcp.pop %v1346
      %v1376 = vmul.f32 1.0, %v1375
      %v1377 = vrcp.pop %v1347
      %v1378 = vmul.f32 1.0, %v1377
      %v1379 = vrcp.pop %v1348
      %v1380 = vmul.f32 1.0, %v1379
      %1381 = vst.msk [vmem:[%s418] sm:$0xff] %vm490, %v1350
      %1382 = vst.msk [vmem:[%s418 + $0x8] sm:$0xff] %vm490, %v1352
      %1383 = vst.msk [vmem:[%s418 + $0x10] sm:$0xff] %vm490, %v1354
      %1384 = vst.msk [vmem:[%s418 + $0x18] sm:$0xff] %vm490, %v1356
      %1385 = vst.msk [vmem:[%s418 + $0x20] sm:$0xff] %vm490, %v1358
      %1386 = vst.msk [vmem:[%s418 + $0x28] sm:$0xff] %vm490, %v1360
      %1387 = vst.msk [vmem:[%s418 + $0x30] sm:$0xff] %vm490, %v1362
      %1388 = vst.msk [vmem:[%s418 + $0x38] sm:$0xff] %vm490, %v1364
      %1389 = vst.msk [vmem:[%s418 + $0x40] sm:$0xff] %vm490, %v1366
      %1390 = vst.msk [vmem:[%s418 + $0x48] sm:$0xff] %vm490, %v1368
      %1391 = vst.msk [vmem:[%s418 + $0x50] sm:$0xff] %vm490, %v1370
      %1392 = vst.msk [vmem:[%s418 + $0x58] sm:$0xff] %vm490, %v1372
      %1393 = vst.msk [vmem:[%s418 + $0x60] sm:$0xff] %vm490, %v1374
      %1394 = vst.msk [vmem:[%s418 + $0x68] sm:$0xff] %vm490, %v1376
      %1395 = vst.msk [vmem:[%s418 + $0x70] sm:$0xff] %vm490, %v1378
      %1396 = vst.msk [vmem:[%s418 + $0x78] sm:$0xff] %vm490, %v1380
      %vm1397 = vcmask 261120
      %1398 = vst.msk [vmem:[%s424] sm:$0xff] %vm1397, %v734
      %1399 = vst.msk [vmem:[%s424 + $0x8] sm:$0xff] %vm1397, %v737
      %1400 = vst.msk [vmem:[%s424 + $0x10] sm:$0xff] %vm1397, %v742
      %1401 = vst.msk [vmem:[%s424 + $0x18] sm:$0xff] %vm1397, %v745
      %1402 = vst.msk [vmem:[%s424 + $0x20] sm:$0xff] %vm1397, %v750
      %1403 = vst.msk [vmem:[%s424 + $0x28] sm:$0xff] %vm1397, %v753
      %1404 = vst.msk [vmem:[%s424 + $0x30] sm:$0xff] %vm1397, %v758
      %1405 = vst.msk [vmem:[%s424 + $0x38] sm:$0xff] %vm1397, %v761
      %1406 = vst.msk [vmem:[%s424 + $0x40] sm:$0xff] %vm1397, %v766
      %1407 = vst.msk [vmem:[%s424 + $0x48] sm:$0xff] %vm1397, %v769
      %1408 = vst.msk [vmem:[%s424 + $0x50] sm:$0xff] %vm1397, %v774
      %1409 = vst.msk [vmem:[%s424 + $0x58] sm:$0xff] %vm1397, %v777
      %1410 = vst.msk [vmem:[%s424 + $0x60] sm:$0xff] %vm1397, %v782
      %1411 = vst.msk [vmem:[%s424 + $0x68] sm:$0xff] %vm1397, %v785
      %1412 = vst.msk [vmem:[%s424 + $0x70] sm:$0xff] %vm1397, %v790
      %1413 = vst.msk [vmem:[%s424 + $0x78] sm:$0xff] %vm1397, %v793
      %s1414 = smul.u32 16, %s23
      %p1415 = scmp.lt.s32.totalorder %s1414, 31
      %s1416 = scalar_select %p1415, %s1414, 31
      %s1417 = smul.addr %s1416, 8
      %s1418 = scalar_lea.vmem %s10, %s1417
      %s1419 = smul.u32 16, %s23
      %p1420 = scmp.lt.s32.totalorder %s1419, 31
      %s1421 = scalar_select %p1420, %s1419, 31
      %s1422 = smul.addr %s1421, 8
      %s1423 = scalar_lea.vmem %s11, %s1422
      // Predicated region
      $region61: #{tpu_custom_call.1} parent=59 // pred_check
        %p1424 = pneg %p261
      $region62: #{tpu_custom_call.1} parent=59 // pred_check_branch
        %1426 = sbr.rel (%p1424) target = $region64
      $region63: #{tpu_custom_call.1} parent=59 // pred_region
        %s1427 = smul.u32 16, %s23
      $region64: #{tpu_custom_call.1} parent=59 // pred_fallthru
        _
      // Predicated region
      $region65: #{tpu_custom_call.1} parent=59 // pred_check
        %p1428 = pneg %p287
      $region66: #{tpu_custom_call.1} parent=59 // pred_check_branch
        %1430 = sbr.rel (%p1428) target = $region68
      $region67: #{tpu_custom_call.1} parent=59 // pred_region
        %s1431 = smul.u32 16, %s23
      $region68: #{tpu_custom_call.1} parent=59 // pred_fallthru
        _
    $region60: #{tpu_custom_call.1} parent=5 // pred_fallthru
      _
    %p1432 = scmp.le.s32.totalorder 2, %s18
    // Predicated region
    $region69: #{tpu_custom_call.1} parent=5 // pred_check
      %p1433 = pneg %p1432
    $region70: #{tpu_custom_call.1} parent=5 // pred_check_branch
      %1435 = sbr.rel (%p1433) target = $region72
    $region71: #{tpu_custom_call.1} parent=5 // pred_region
      %s1436 = ssub.s32 %s18, 2
      // Predicated region
      $region73: #{tpu_custom_call.1} parent=71 // pred_check
        %p1437 = pneg %p267
      $region74: #{tpu_custom_call.1} parent=71 // pred_check_branch
        %1439 = sbr.rel (%p1437) target = $region76
      $region75: #{tpu_custom_call.1} parent=71 // pred_region
        %s1440 = smul.u32 16, %s24
        %p1441 = scmp.lt.s32.totalorder %s1440, 31
        %s1442 = scalar_select %p1441, %s1440, 31
        %s1443 = smul.addr %s1442, 8
        %s1444 = scalar_lea.vmem %s10, %s1443
      $region76: #{tpu_custom_call.1} parent=71 // pred_fallthru
        _
      // Predicated region
      $region77: #{tpu_custom_call.1} parent=71 // pred_check
        %p1445 = pneg %p293
      $region78: #{tpu_custom_call.1} parent=71 // pred_check_branch
        %1447 = sbr.rel (%p1445) target = $region80
      $region79: #{tpu_custom_call.1} parent=71 // pred_region
        %s1448 = smul.u32 16, %s24
        %p1449 = scmp.lt.s32.totalorder %s1448, 31
        %s1450 = scalar_select %p1449, %s1448, 31
        %s1451 = smul.addr %s1450, 8
        %s1452 = scalar_lea.vmem %s11, %s1451
      $region80: #{tpu_custom_call.1} parent=71 // pred_fallthru
        _
    $region72: #{tpu_custom_call.1} parent=5 // pred_fallthru
      _
  $region6: #{tpu_custom_call.1} parent=0 // loop_footer
    %s22 = sadd.s32 1, %s18
  $region7: #{tpu_custom_call.1} parent=0 // loop_footer_branch
    %17 = sbr.rel target = $region3
  $region8: #{tpu_custom_call.1} parent=0 // loop_exit
    _

</llo_original>
